<compile_context>
chip_gen: v5e
topology: v5e:2x2
jax: 0.10.0
libtpu: 0.0.40
codegen_flags: <defaults>
</compile_context>

<pallas_src>
import functools

import jax
import jax.numpy as jnp
from jax.experimental import pallas as pl
from jax.experimental.pallas import tpu as pltpu


# ----------------------------------------------------------------------------
# Tiling helpers
# ----------------------------------------------------------------------------
def _round_up(x, m):
    return ((x + m - 1) // m) * m


def _pick_tile(dim, target, align=128):
    """Largest multiple of `align` that divides `dim` and is <= target; else full dim."""
    if dim <= target:
        return dim
    best = None
    d = align
    while d <= target:
        if dim % d == 0:
            best = d
        d += align
    return best if best is not None else dim


@functools.lru_cache(maxsize=1)
def _tile_targets():
    """Generation-aware GEMM tile targets (TM, TN, TK, vmem_limit_bytes)."""
    try:
        kind = jax.devices()[0].device_kind.lower()
    except Exception:  # pragma: no cover
        kind = ""
    if "v5 lite" in kind or "v5e" in kind or "v5litepod" in kind:
        # v5e: 4x128x128 MXU, 16 MiB default scoped VMEM -> keep modest tiles.
        return 256, 128, 512, None
    # v6e / v7x: 256x256 MXU; larger M/K tiles cut per-step overhead and weight
    # re-streaming.  bf16 A/B double-buffered + f32 acc stays ~4-6 MiB.
    return 512, 256, 1024, 32 * 1024 * 1024


# ----------------------------------------------------------------------------
# Fused conv GEMM kernel:
#   K-accumulate (f32 scratch) + (scale, shift, LeakyReLU) epilogue (+ optional
#   fused BatchNorm column statistics) -> bf16 output store.
# ----------------------------------------------------------------------------
def _conv_gemm_kernel(a_ref, b_ref, scale_ref, shift_ref, *rest, alpha, with_stats):
    if with_stats:
        o_ref, sum_ref, sq_ref, acc_ref = rest
    else:
        o_ref, acc_ref = rest

    @pl.when(pl.program_id(2) == 0)
    def _():
        acc_ref[...] = jnp.zeros_like(acc_ref)

    acc_ref[...] += jnp.dot(a_ref[...], b_ref[...],
                            preferred_element_type=jnp.float32)

    @pl.when(pl.program_id(2) == pl.num_programs(2) - 1)
    def _():
        acc = acc_ref[...]
        y = acc * scale_ref[...] + shift_ref[...]
        if alpha != 1.0:                       # alpha == 1.0 -> identity (no act)
            y = jnp.where(y >= 0, y, alpha * y)
        o_ref[...] = y.astype(o_ref.dtype)
        if with_stats:
            # Per-(M-tile, N-tile) partial column sums straight from the f32
            # accumulator; broadcast across 8 sublane rows so the stats output
            # block is (8, tn)-legal.  The jnp reduction divides by 8.
            s = jnp.sum(acc, axis=0, keepdims=True)
            sq = jnp.sum(acc * acc, axis=0, keepdims=True)
            sum_ref[...] = jnp.broadcast_to(s, sum_ref.shape)
            sq_ref[...] = jnp.broadcast_to(sq, sq_ref.shape)


def conv_gemm(a, b, scale, shift, alpha, with_stats=False, out_dtype=jnp.bfloat16):
    """(M,K) @ (K,N) with fused per-column affine + LeakyReLU(alpha) epilogue.

    Operands are cast to bf16 for the MXU; accumulation is f32 in VMEM scratch;
    the output is stored as `out_dtype` (bf16 by default).  With `with_stats`,
    also returns per-column sum and sum-of-squares of the (pre-epilogue) f32
    accumulator, fused into the last-K epilogue.
    """
    M, K = a.shape
    N = b.shape[1]
    TM, TN, TK, vmem_limit = _tile_targets()
    tm = min(TM, _round_up(M, 8))
    Mp = _round_up(M, tm)
    tn = _pick_tile(N, TN)
    tk = _pick_tile(K, TK)                     # exact divisor of K: no K zero-padding

    a = a.astype(jnp.bfloat16)
    b = b.astype(jnp.bfloat16)
    if Mp != M:
        a = jnp.pad(a, ((0, Mp - M), (0, 0)))
    scale = jnp.broadcast_to(jnp.asarray(scale, jnp.float32).reshape(1, -1), (1, N))
    shift = jnp.broadcast_to(jnp.asarray(shift, jnp.float32).reshape(1, -1), (1, N))

    mtiles = Mp // tm
    in_specs = [
        pl.BlockSpec((tm, tk), lambda i, j, k: (i, k)),
        pl.BlockSpec((tk, tn), lambda i, j, k: (k, j)),
        pl.BlockSpec((1, tn), lambda i, j, k: (0, j)),
        pl.BlockSpec((1, tn), lambda i, j, k: (0, j)),
    ]
    cp_kwargs = dict(dimension_semantics=("parallel", "parallel", "arbitrary"))
    if vmem_limit is not None:
        cp_kwargs["vmem_limit_bytes"] = int(vmem_limit)

    if with_stats:
        out_shape = (jax.ShapeDtypeStruct((Mp, N), out_dtype),
                     jax.ShapeDtypeStruct((mtiles * 8, N), jnp.float32),
                     jax.ShapeDtypeStruct((mtiles * 8, N), jnp.float32))
        out_specs = (pl.BlockSpec((tm, tn), lambda i, j, k: (i, j)),
                     pl.BlockSpec((8, tn), lambda i, j, k: (i, j)),
                     pl.BlockSpec((8, tn), lambda i, j, k: (i, j)))
    else:
        out_shape = jax.ShapeDtypeStruct((Mp, N), out_dtype)
        out_specs = pl.BlockSpec((tm, tn), lambda i, j, k: (i, j))

    res = pl.pallas_call(
        functools.partial(_conv_gemm_kernel, alpha=float(alpha),
                          with_stats=with_stats),
        out_shape=out_shape,
        grid=(mtiles, N // tn, K // tk),
        in_specs=in_specs,
        out_specs=out_specs,
        scratch_shapes=[pltpu.VMEM((tm, tn), jnp.float32)],
        compiler_params=pltpu.CompilerParams(**cp_kwargs),
    )(a, b, scale, shift)

    if with_stats:
        out, s, sq = res
        out = out[:M] if Mp != M else out
        col_sum = jnp.sum(s, axis=0) / 8.0        # undo the 8-row broadcast
        col_sq = jnp.sum(sq, axis=0) / 8.0
        return out, col_sum, col_sq
    out = res
    return out[:M] if Mp != M else out


# ----------------------------------------------------------------------------
# BatchNorm affine + LeakyReLU kernel (stats come fused from the conv GEMM)
# ----------------------------------------------------------------------------
def _affine_act_kernel(x_ref, scale_ref, shift_ref, o_ref, *, alpha):
    y = x_ref[...].astype(jnp.float32) * scale_ref[...] + shift_ref[...]
    if alpha != 1.0:
        y = jnp.where(y >= 0, y, alpha * y)
    o_ref[...] = y.astype(o_ref.dtype)


def affine_act(y, scale, shift, alpha):
    """leaky_relu(y * scale + shift, alpha), tiled over rows; bf16 in/out."""
    M, C = y.shape
    tm = min(512, _round_up(M, 8))
    Mp = _round_up(M, tm)
    if Mp != M:
        y = jnp.pad(y, ((0, Mp - M), (0, 0)))
    scale = jnp.broadcast_to(jnp.asarray(scale, jnp.float32).reshape(1, -1), (1, C))
    shift = jnp.broadcast_to(jnp.asarray(shift, jnp.float32).reshape(1, -1), (1, C))
    out = pl.pallas_call(
        functools.partial(_affine_act_kernel, alpha=float(alpha)),
        out_shape=jax.ShapeDtypeStruct((Mp, C), jnp.bfloat16),
        grid=(Mp // tm,),
        in_specs=[pl.BlockSpec((tm, C), lambda i: (i, 0)),
                  pl.BlockSpec((1, C), lambda i: (0, 0)),
                  pl.BlockSpec((1, C), lambda i: (0, 0))],
        out_specs=pl.BlockSpec((tm, C), lambda i: (i, 0)),
        compiler_params=pltpu.CompilerParams(dimension_semantics=("parallel",)),
    )(y.astype(jnp.bfloat16), scale, shift)
    return out[:M] if Mp != M else out


# ----------------------------------------------------------------------------
# LPIPS layer kernel: spatially tiled, batch handled inside the block, resident
# (B, 128) accumulator output.
# ----------------------------------------------------------------------------
def _lpips_layer_kernel(x0_ref, x1_ref, w_ref, o_ref, *, inv_hw):
    @pl.when(pl.program_id(0) == 0)
    def _():
        o_ref[...] = jnp.zeros_like(o_ref)

    x0 = x0_ref[...].astype(jnp.float32)              # (B, ts, C)
    x1 = x1_ref[...].astype(jnp.float32)
    # Channel L2 normalization on the EUP (rsqrt, eps inside the sqrt so that
    # zero-padded spatial rows stay finite and contribute exactly 0).
    inv0 = jax.lax.rsqrt(jnp.sum(x0 * x0, axis=2, keepdims=True) + 1e-20)
    inv1 = jax.lax.rsqrt(jnp.sum(x1 * x1, axis=2, keepdims=True) + 1e-20)
    d = x0 * inv0 - x1 * inv1
    wb = w_ref[...].reshape(1, 1, d.shape[-1])        # (1, 1, C)
    weighted = (d * d) * wb
    s = jnp.sum(weighted, axis=2, keepdims=True)      # (B, ts, 1)
    part = jnp.sum(s, axis=1) * inv_hw                # (B, 1)
    o_ref[...] += jnp.broadcast_to(part, o_ref.shape)


def lpips_layer(f0, f1, lin_w):
    """mean_{hw} sum_c w_c * (norm(f0) - norm(f1))^2 per batch element -> (B,)."""
    B, H, W, C = f0.shape
    HW = H * W
    ts = min(256, _round_up(HW, 8))
    HWp = _round_up(HW, ts)
    a0 = f0.reshape(B, HW, C).astype(jnp.bfloat16)
    a1 = f1.reshape(B, HW, C).astype(jnp.bfloat16)
    if HWp != HW:
        # zero rows normalize to zero and contribute nothing to the sum
        a0 = jnp.pad(a0, ((0, 0), (0, HWp - HW), (0, 0)))
        a1 = jnp.pad(a1, ((0, 0), (0, HWp - HW), (0, 0)))
    w = jnp.asarray(lin_w, jnp.float32)
    if w.shape[0] != C:                                # lane-padded feature channels
        w = jnp.pad(w, (0, C - w.shape[0]))
    w = w.reshape(1, C)

    out = pl.pallas_call(
        functools.partial(_lpips_layer_kernel, inv_hw=1.0 / HW),
        out_shape=jax.ShapeDtypeStruct((B, 128), jnp.float32),
        grid=(HWp // ts,),
        in_specs=[pl.BlockSpec((B, ts, C), lambda t: (0, t, 0)),
                  pl.BlockSpec((B, ts, C), lambda t: (0, t, 0)),
                  pl.BlockSpec((1, C), lambda t: (0, 0))],
        out_specs=pl.BlockSpec((B, 128), lambda t: (0, 0)),
        compiler_params=pltpu.CompilerParams(dimension_semantics=("arbitrary",)),
    )(a0, a1, w)
    return out[:, 0]


# ----------------------------------------------------------------------------
# Conv / network building blocks (im2col glue in JAX, fused GEMM in Pallas)
# ----------------------------------------------------------------------------
def _im2col(x, kh, kw, stride, pad):
    B, H, W, Cin = x.shape
    Ho = (H + 2 * pad - kh) // stride + 1
    Wo = (W + 2 * pad - kw) // stride + 1
    xp = jnp.pad(x, ((0, 0), (pad, pad), (pad, pad), (0, 0)))
    cols = []
    for dy in range(kh):
        for dx in range(kw):
            cols.append(xp[:, dy:dy + stride * (Ho - 1) + 1:stride,
                           dx:dx + stride * (Wo - 1) + 1:stride, :])
    patches = jnp.concatenate(cols, axis=-1).reshape(B * Ho * Wo, kh * kw * Cin)
    return patches, Ho, Wo


def conv_block(x, w, b=None, gamma=None, beta=None, stride=1, pad=1, alpha=0.0):
    """Conv2d (NHWC) + bias/BatchNorm(train-mode batch stats) + LeakyReLU(alpha).

    alpha = 0.0 -> ReLU, alpha = 0.2 -> LeakyReLU(0.2), alpha = 1.0 -> no activation.
    Output channels below 128 are zero-padded up to 128 so stores are lane-dense;
    the zero channels propagate harmlessly (weights of later layers are zero-
    padded on the matching input channels).
    """
    B = x.shape[0]
    kh, kw, wcin, cout = w.shape
    xc = x.shape[-1]
    if xc != wcin:                       # previous layer emitted lane-padded channels
        w = jnp.pad(w, ((0, 0), (0, 0), (0, xc - wcin), (0, 0)))
    cout_p = _round_up(cout, 128)
    if cout_p != cout:                   # lane-dense output padding (zero filters)
        w = jnp.pad(w, ((0, 0), (0, 0), (0, 0), (0, cout_p - cout)))
        if b is not None:
            b = jnp.pad(jnp.asarray(b, jnp.float32), (0, cout_p - cout))
        if gamma is not None:
            gamma = jnp.pad(jnp.asarray(gamma, jnp.float32), (0, cout_p - cout))
            beta = jnp.pad(jnp.asarray(beta, jnp.float32), (0, cout_p - cout))

    # TODO(synk): fuse im2col into the GEMM (K axis over (dy,dx,Cin) with haloed
    # input blocks) to avoid materializing the kh*kw-expanded patch matrix in HBM.
    patches, Ho, Wo = _im2col(x.astype(jnp.bfloat16), kh, kw, stride, pad)
    wmat = w.reshape(kh * kw * w.shape[2], cout_p)

    if gamma is None:
        shift = b if b is not None else jnp.zeros((cout_p,), jnp.float32)
        y = conv_gemm(patches, wmat, jnp.ones((cout_p,), jnp.float32), shift, alpha)
    else:
        # BatchNorm (train-mode batch stats): GEMM with identity epilogue and
        # fused column statistics -> fused affine + LeakyReLU pass.
        y, col_sum, col_sq = conv_gemm(
            patches, wmat, jnp.ones((cout_p,), jnp.float32),
            jnp.zeros((cout_p,), jnp.float32), 1.0, with_stats=True)
        M = y.shape[0]
        mean = col_sum / M
        var = jnp.maximum(col_sq / M - mean * mean, 0.0)   # biased var, clamped
        scale = gamma / jnp.sqrt(var + 1e-5)
        shift = beta - mean * scale
        y = affine_act(y, scale, shift, alpha)
    return y.reshape(B, Ho, Wo, cout_p)


def conv_head(x, w, b, stride=1, pad=1):
    """Cout=1 discriminator head: a Pallas launch is pure overhead -> jnp matvec."""
    B = x.shape[0]
    kh, kw, wcin, cout = w.shape
    xc = x.shape[-1]
    if xc != wcin:
        w = jnp.pad(w, ((0, 0), (0, 0), (0, xc - wcin), (0, 0)))
    patches, Ho, Wo = _im2col(x.astype(jnp.float32), kh, kw, stride, pad)
    y = patches @ w.reshape(-1, cout).astype(jnp.float32) + b.astype(jnp.float32)
    return y.reshape(B, Ho, Wo, cout)


def maxpool2(x):
    B, H, W, C = x.shape
    return x.reshape(B, H // 2, 2, W // 2, 2, C).max(axis=(2, 4))


def vgg16_features(x, p):
    """Returns [relu1_2, relu2_2, relu3_3, relu4_3, relu5_3] feature maps (NHWC)."""
    feats = []
    h = x
    h = conv_block(h, p['vgg_w'][0], p['vgg_b'][0], alpha=0.0)
    h = conv_block(h, p['vgg_w'][1], p['vgg_b'][1], alpha=0.0)
    feats.append(h)
    h = maxpool2(h)
    h = conv_block(h, p['vgg_w'][2], p['vgg_b'][2], alpha=0.0)
    h = conv_block(h, p['vgg_w'][3], p['vgg_b'][3], alpha=0.0)
    feats.append(h)
    h = maxpool2(h)
    for i in (4, 5, 6):
        h = conv_block(h, p['vgg_w'][i], p['vgg_b'][i], alpha=0.0)
    feats.append(h)
    h = maxpool2(h)
    for i in (7, 8, 9):
        h = conv_block(h, p['vgg_w'][i], p['vgg_b'][i], alpha=0.0)
    feats.append(h)
    h = maxpool2(h)
    for i in (10, 11, 12):
        h = conv_block(h, p['vgg_w'][i], p['vgg_b'][i], alpha=0.0)
    feats.append(h)
    return feats


# ScalingLayer buffers exactly as in the provided PyTorch module.
_LPIPS_SHIFT = jnp.array([-0.3, -0.088, -0.188], jnp.float32)
_LPIPS_SCALE = jnp.array([0.458, 0.448, 0.45], jnp.float32)


def lpips(x, y, p):
    """LPIPS perceptual distance; x, y NHWC in [-1, 1]. Returns (B, 1, 1, 1)."""
    def scale_in(z):                 # ScalingLayer: tiny elementwise op, left to XLA
        return (z - _LPIPS_SHIFT) / _LPIPS_SCALE

    B = x.shape[0]
    # Single batched VGG pass over [x; y]: conv weights stream from HBM once.
    both = jnp.concatenate([scale_in(x), scale_in(y)], axis=0)
    feats = vgg16_features(both, p)
    val = None
    for i, f in enumerate(feats):
        r = lpips_layer(f[:B], f[B:], p['lin'][i])   # (B,) -- dropout is identity in eval()
        val = r if val is None else val + r
    return val.reshape(B, 1, 1, 1)


def discriminator(x, p):
    """PatchGAN discriminator (num_layers=3, conv_filters=64), as in the spec:
    stride-2 first conv, stride-1 for the remaining 4x4 convs. x: NHWC -> (B,Ho,Wo,1)."""
    h = conv_block(x, p['d_w'][0], p['d_b'][0], stride=2, pad=1, alpha=0.2)
    h = conv_block(h, p['d_w'][1], gamma=p['d_gamma'][0], beta=p['d_beta'][0],
                   stride=1, pad=1, alpha=0.2)
    h = conv_block(h, p['d_w'][2], gamma=p['d_gamma'][1], beta=p['d_beta'][1],
                   stride=1, pad=1, alpha=0.2)
    h = conv_block(h, p['d_w'][3], gamma=p['d_gamma'][2], beta=p['d_beta'][2],
                   stride=1, pad=1, alpha=0.2)
    h = conv_head(h, p['d_w'][4], p['d_b'][1], stride=1, pad=1)   # Cout=1, linear
    return h


# ----------------------------------------------------------------------------
# VQLPIPSWithDiscriminator forward
# ----------------------------------------------------------------------------
def vq_lpips_forward(params, codebook_loss, inputs_nchw, reconstructions_nchw,
                     optimiser_idx, global_step, last_layer_grads=None, split='train',
                     disc_start=10000, codebook_weight=1.0, pixelloss_weight=1.0,
                     perceptual_weight=1.0, disc_factor=1.0, disc_weight=0.8):
    # NCHW (PyTorch) -> NHWC (kernel layout)
    x = jnp.transpose(inputs_nchw, (0, 2, 3, 1)).astype(jnp.float32)
    xr = jnp.transpose(reconstructions_nchw, (0, 2, 3, 1)).astype(jnp.float32)

    percep = lpips(x, xr, params)                        # (B,1,1,1)
    # Tiny scalar reductions are plain jnp (XLA fuses them for free).
    abs_mean = jnp.mean(jnp.abs(x - xr))
    p_mean = jnp.mean(percep)
    # rec_loss = |x - xr| + w * percep (broadcast); only its mean is consumed downstream.
    nll_loss = abs_mean + perceptual_weight * p_mean
    rec_loss_mean = nll_loss

    df = 0.0 if global_step < disc_start else disc_factor

    if optimiser_idx == 'generator':
        logits_fake = discriminator(xr, params)
        generator_loss = -jnp.mean(logits_fake)
        # TODO(synk): the real module gets these grads from torch.autograd.grad w.r.t.
        # the generator's last layer; here they are supplied externally (synthetic).
        g_nll, g_gen = last_layer_grads
        d_weight = jnp.clip(
            jnp.linalg.norm(g_nll) / (jnp.linalg.norm(g_gen) + 1e-4), 0.0, 1e4
        ) * disc_weight
        cb_mean = jnp.mean(codebook_loss)
        loss = nll_loss + d_weight * df * generator_loss + codebook_weight * cb_mean
        loss_info = {
            f'{split}/total_loss_step': loss,
            f'{split}/quant_loss_step': cb_mean,
            f'{split}/nll_loss_step': nll_loss,
            f'{split}/rec_loss_step': rec_loss_mean,
            f'{split}/p_loss_step': p_mean,
            f'{split}/d_weight_step': d_weight,
            f'{split}/disc_factor_step': jnp.asarray(df, jnp.float32),
            f'{split}/g_loss_step': generator_loss,
        }
        return loss, loss_info

    if optimiser_idx == 'discriminator':
        # NOTE: kept as two discriminator calls (not batched) because BatchNorm
        # uses per-call batch statistics in train mode, matching the PyTorch
        # module's two separate forward passes.
        logits_real = discriminator(x, params)
        logits_fake = discriminator(xr, params)
        loss_real = jnp.mean(jax.nn.relu(1.0 - logits_real))
        loss_fake = jnp.mean(jax.nn.relu(1.0 + logits_fake))
        loss = df * 0.5 * (loss_real + loss_fake)
        loss_info = {
            f'{split}/disc_loss_step': loss,
            f'{split}/logits_real_step': jnp.mean(logits_real),
            f'{split}/logits_fake_step': jnp.mean(logits_fake),
        }
        return loss, loss_info

    raise ValueError(optimiser_idx)


# ----------------------------------------------------------------------------
# Deterministic parameter init (synthetic weights; shapes match the PyTorch module)
# ----------------------------------------------------------------------------
def init_params(key):
    ks = list(jax.random.split(key, 64))
    ki = iter(ks)
    p = {}

    # VGG16 feature convs (13 layers of 3x3 conv+ReLU, with bias), (kh,kw,Cin,Cout)
    vgg_cfg = [(3, 64), (64, 64),
               (64, 128), (128, 128),
               (128, 256), (256, 256), (256, 256),
               (256, 512), (512, 512), (512, 512),
               (512, 512), (512, 512), (512, 512)]
    vw, vb = [], []
    for cin, cout in vgg_cfg:
        std = (2.0 / (9.0 * cin)) ** 0.5
        vw.append(std * jax.random.normal(next(ki), (3, 3, cin, cout), jnp.float32))
        vb.append(jnp.zeros((cout,), jnp.float32))
    p['vgg_w'], p['vgg_b'] = vw, vb

    # LPIPS NetLinLayer 1x1-conv weights (chn_in -> 1, no bias)
    p['lin'] = [0.01 * jnp.abs(jax.random.normal(next(ki), (c,), jnp.float32))
                for c in (64, 128, 256, 512, 512)]

    # PatchGAN discriminator: convs N(0, 0.02) (weights_init), BN gamma N(1,0.02), beta N(0,1)
    d_cfg = [(3, 64), (64, 128), (128, 256), (256, 512), (512, 1)]
    p['d_w'] = [0.02 * jax.random.normal(next(ki), (4, 4, cin, cout), jnp.float32)
                for cin, cout in d_cfg]
    p['d_b'] = [jnp.zeros((64,), jnp.float32), jnp.zeros((1,), jnp.float32)]
    p['d_gamma'] = [1.0 + 0.02 * jax.random.normal(next(ki), (c,), jnp.float32)
                    for c in (128, 256, 512)]
    p['d_beta'] = [jax.random.normal(next(ki), (c,), jnp.float32)
                   for c in (128, 256, 512)]
    return p


# ----------------------------------------------------------------------------
if __name__ == "__main__":
    key = jax.random.PRNGKey(0)
    k1, k2, k3, k4, k5, kp = jax.random.split(key, 6)

    B, C, H, W = 2, 3, 16, 16
    inputs = jax.random.uniform(k1, (B, C, H, W), jnp.float32, -1.0, 1.0)
    reconstructions = jax.random.uniform(k2, (B, C, H, W), jnp.float32, -1.0, 1.0)
    codebook_loss = 0.1 * jax.random.uniform(k3, (B,), jnp.float32)

    # Synthetic stand-ins for autograd grads of (nll_loss, generator_loss) w.r.t. last_layer.
    last_layer_shape = (3, 32, 3, 3)
    g_nll = jax.random.normal(k4, last_layer_shape, jnp.float32)
    g_gen = jax.random.normal(k5, last_layer_shape, jnp.float32)

    params = init_params(kp)

    gen_loss, gen_info = vq_lpips_forward(
        params, codebook_loss, inputs, reconstructions,
        optimiser_idx='generator', global_step=20000,
        last_layer_grads=(g_nll, g_gen))

    disc_loss, disc_info = vq_lpips_forward(
        params, codebook_loss, inputs, reconstructions,
        optimiser_idx='discriminator', global_step=20000)

    jax.block_until_ready((gen_loss, gen_info, disc_loss, disc_info))
    print("KERNEL_OK")
</pallas_src>

<mosaic_0001>
module attributes {stable_mosaic.version = 11 : i64} {
  func.func @_conv_gemm_kernel(%arg0: i32, %arg1: i32, %arg2: i32, %arg3: memref<512x27xbf16, #tpu.memory_space<vmem>>, %arg4: memref<27x128xbf16, #tpu.memory_space<vmem>>, %arg5: memref<1x128xf32, #tpu.memory_space<vmem>>, %arg6: memref<1x128xf32, #tpu.memory_space<vmem>>, %arg7: memref<512x128xbf16, #tpu.memory_space<vmem>>, %arg8: memref<512x128xf32, #tpu.memory_space<vmem>>) attributes {dimension_semantics = [#tpu.dimension_semantics<parallel>, #tpu.dimension_semantics<parallel>, #tpu.dimension_semantics<arbitrary>], iteration_bounds = array<i64: 2, 1, 1>, scalar_prefetch = 0 : i64, scratch_operands = 1 : i64, tpu.core_type = #tpu.core_type<tc>, window_params = [{transform_indices = @transform_0, window_bounds = array<i64: 512, 27>}, {transform_indices = @transform_1, window_bounds = array<i64: 27, 128>}, {transform_indices = @transform_2, window_bounds = array<i64: 1, 128>}, {transform_indices = @transform_3, window_bounds = array<i64: 1, 128>}, {transform_indices = @transform_4, window_bounds = array<i64: 512, 128>}]} {
    %c0_i32 = arith.constant 0 : i32
    %0 = arith.cmpi eq, %arg2, %c0_i32 : i32
    %1 = arith.extui %0 : i1 to i32
    %c0_i32_0 = arith.constant 0 : i32
    %2 = arith.cmpi ne, %1, %c0_i32_0 : i32
    scf.if %2 {
      %cst_10 = arith.constant 0.000000e+00 : f32
      %12 = vector.broadcast %cst_10 : f32 to vector<512x128xf32>
      %c0_11 = arith.constant 0 : index
      %c0_12 = arith.constant 0 : index
      %13 = vector.load %arg8[%c0_11, %c0_12] : memref<512x128xf32, #tpu.memory_space<vmem>>, vector<512x128xf32>
      tpu.vector_store %arg8[%c0_11, %c0_12], %12 {strides = array<i32>} : memref<512x128xf32, #tpu.memory_space<vmem>>, vector<512x128xf32>,
    } else {
    }
    %c0 = arith.constant 0 : index
    %c0_1 = arith.constant 0 : index
    %3 = vector.load %arg8[%c0, %c0_1] : memref<512x128xf32, #tpu.memory_space<vmem>>, vector<512x128xf32>
    %c0_2 = arith.constant 0 : index
    %c0_3 = arith.constant 0 : index
    %4 = vector.load %arg3[%c0_2, %c0_3] : memref<512x27xbf16, #tpu.memory_space<vmem>>, vector<512x27xbf16>
    %c0_4 = arith.constant 0 : index
    %c0_5 = arith.constant 0 : index
    %5 = vector.load %arg4[%c0_4, %c0_5] : memref<27x128xbf16, #tpu.memory_space<vmem>>, vector<27x128xbf16>
    %cst = arith.constant dense<0.000000e+00> : vector<512x128xf32>
    %6 = tpu.matmul %4, %5, %cst {dimension_numbers = #tpu.dot_dimension_numbers<[1], [0], [0], [1], [0, 0, 1, 1], [], []>} : vector<512x27xbf16>, vector<27x128xbf16>, vector<512x128xf32> -> vector<512x128xf32>
    %7 = arith.addf %3, %6 : vector<512x128xf32>
    %c0_6 = arith.constant 0 : index
    %c0_7 = arith.constant 0 : index
    %8 = vector.load %arg8[%c0_6, %c0_7] : memref<512x128xf32, #tpu.memory_space<vmem>>, vector<512x128xf32>
    tpu.vector_store %arg8[%c0_6, %c0_7], %7 {strides = array<i32>} : memref<512x128xf32, #tpu.memory_space<vmem>>, vector<512x128xf32>,
    %c0_i32_8 = arith.constant 0 : i32
    %9 = arith.cmpi eq, %arg2, %c0_i32_8 : i32
    %10 = arith.extui %9 : i1 to i32
    %c0_i32_9 = arith.constant 0 : i32
    %11 = arith.cmpi ne, %10, %c0_i32_9 : i32
    scf.if %11 {
      %c0_10 = arith.constant 0 : index
      %c0_11 = arith.constant 0 : index
      %12 = vector.load %arg8[%c0_10, %c0_11] : memref<512x128xf32, #tpu.memory_space<vmem>>, vector<512x128xf32>
      %c0_12 = arith.constant 0 : index
      %c0_13 = arith.constant 0 : index
      %13 = vector.load %arg5[%c0_12, %c0_13] : memref<1x128xf32, #tpu.memory_space<vmem>>, vector<1x128xf32>
      %14 = vector.broadcast %13 : vector<1x128xf32> to vector<512x128xf32>
      %15 = arith.mulf %12, %14 : vector<512x128xf32>
      %c0_14 = arith.constant 0 : index
      %c0_15 = arith.constant 0 : index
      %16 = vector.load %arg6[%c0_14, %c0_15] : memref<1x128xf32, #tpu.memory_space<vmem>>, vector<1x128xf32>
      %17 = vector.broadcast %16 : vector<1x128xf32> to vector<512x128xf32>
      %18 = arith.addf %15, %17 : vector<512x128xf32>
      %cst_16 = arith.constant 0.000000e+00 : f32
      %19 = vector.broadcast %cst_16 : f32 to vector<512x128xf32>
      %20 = arith.cmpf oge, %18, %19 : vector<512x128xf32>
      %cst_17 = arith.constant 0.000000e+00 : f32
      %21 = vector.broadcast %cst_17 : f32 to vector<512x128xf32>
      %22 = arith.mulf %21, %18 : vector<512x128xf32>
      %23 = arith.select %20, %18, %22 : vector<512x128xi1>, vector<512x128xf32>
      %24 = arith.truncf %23 : vector<512x128xf32> to vector<512x128xbf16>
      %c0_18 = arith.constant 0 : index
      %c0_19 = arith.constant 0 : index
      %25 = vector.load %arg7[%c0_18, %c0_19] : memref<512x128xbf16, #tpu.memory_space<vmem>>, vector<512x128xbf16>
      tpu.vector_store %arg7[%c0_18, %c0_19], %24 {strides = array<i32>} : memref<512x128xbf16, #tpu.memory_space<vmem>>, vector<512x128xbf16>,
    } else {
    }
    return
  }
  func.func @transform_0(%arg0: i32, %arg1: i32, %arg2: i32) -> (i32, i32) {
    %c0_i32 = arith.constant 0 : i32
    return %arg0, %arg2 : i32, i32
  }
  func.func @transform_1(%arg0: i32, %arg1: i32, %arg2: i32) -> (i32, i32) {
    %c0_i32 = arith.constant 0 : i32
    return %arg2, %arg1 : i32, i32
  }
  func.func @transform_2(%arg0: i32, %arg1: i32, %arg2: i32) -> (i32, i32) {
    %c0_i32 = arith.constant 0 : i32
    %c0_i32_0 = arith.constant 0 : i32
    return %c0_i32, %arg1 : i32, i32
  }
  func.func @transform_3(%arg0: i32, %arg1: i32, %arg2: i32) -> (i32, i32) {
    %c0_i32 = arith.constant 0 : i32
    %c0_i32_0 = arith.constant 0 : i32
    return %c0_i32, %arg1 : i32, i32
  }
  func.func @transform_4(%arg0: i32, %arg1: i32, %arg2: i32) -> (i32, i32) {
    %c0_i32 = arith.constant 0 : i32
    return %arg0, %arg1 : i32, i32
  }
}

</mosaic_0001>

<llo_original>
// kernel: tpu_custom_call.1
$region0: #{tpu_custom_call.1}
  #allocation0 [shape = 'u32[]', space=smem, size = 0x4, offset = 0x4, fixed_abs, tag = 'smem constant byte address 0x4 - core index']
  #allocation1 [shape = 'u32[72,128]{1,0:T(1,128)}', space=vmem, size = 0x9000, scoped, tag = 'internal scratch']
  #allocation2 [shape = 'f32[512,128]{1,0:T(8,128)}', space=vmem, size = 0x40000, scoped, tag = 'scratch operand']
  %s0 = inlined_call_operand.vmem [shape: bf16[1024,27], index: 0, kind: input, shape index: {}]
  %s1 = inlined_call_operand.vmem [shape: bf16[27,128], index: 1, kind: input, shape index: {}]
  %s2 = inlined_call_operand.vmem [shape: f32[1,128], index: 2, kind: input, shape index: {}]
  %s3 = inlined_call_operand.vmem [shape: f32[1,128], index: 3, kind: input, shape index: {}]
  %s4 = inlined_call_operand.hbm [shape: bf16[1024,128], index: 4, kind: output, shape index: {}]
  %s5 = sld [smem:[#allocation0]]
  $region57: #{tpu_custom_call.1} parent=0
    _
  %s7 = ssub.s32 1, %s5
  %s8 = scalar_select 0, %s7, %s5
  $region1: #{tpu_custom_call.1} parent=0
    #allocation3 [shape = 'u8[262144]{0}', space=vmem, size = 0x40000, scoped, tag = 'output window, operand 0']
    #allocation4 [shape = 's32[2]{0}', space=sflag, size = 0x8, scoped, tag = 'scoped memory for tpu_custom_call.1']
    %9 = vsyncpa [#allocation4], 0
    %s10 = scalar_lea.sflag [#allocation4], 1
    %11 = vsyncpa %s10, 0
    loop: start=0, step=1, limit=4
    $region2: #{tpu_custom_call.1} parent=1 // loop_pre_header
      _
    $region3: #{tpu_custom_call.1} parent=1 // loop_header
      %s13 = sphi 0, %s17
      %p14 = scmp.ge.s32.totalorder %s13, 4
      %s20 = sphi 0, %s39
      %s21 = sphi 0, %s35
      %s22 = sphi 0, %s31
      %s23 = sphi 0, %s20
      %s24 = sphi 0, %s21
      %s25 = sphi 0, %s22
      %s26 = sphi 0, %s23
      %s27 = sphi 0, %s24
      %s28 = sphi 0, %s25
      %s44 = sphi 0, %s46
      %s47 = sphi 0, %s44
      %s48 = sphi 0, %s47
      %s64 = sphi 0, %s48
      %s72 = sphi 0, %s74
      %s75 = sphi 0, %s72
      %s76 = sphi 0, %s75
      %s92 = sphi 0, %s76
      %s98 = sphi 0, %s100
      %s101 = sphi 0, %s98
      %s102 = sphi 0, %s101
      %s118 = sphi 0, %s102
      %s124 = sphi 0, %s126
      %s127 = sphi 0, %s124
      %s128 = sphi 0, %s127
      %s144 = sphi 0, %s128
      %s152 = sphi 0, %s154
      %s155 = sphi 0, %s152
      %s156 = sphi 0, %s155
      %s172 = sphi 0, %s156
    $region4: #{tpu_custom_call.1} parent=1 // loop_header_branch
      %16 = sbr.rel (%p14) target = $region8
    $region5: #{tpu_custom_call.1} parent=1 // loop_body
      %s18 = ssub.s32 %s13, 1
      %s19 = ssub.s32 %s13, 2
      %s29 = sadd.s32 1, %s22
      %p30 = scmp.ge.s32.totalorder %s29, 1
      %s31 = scalar_select %p30, 0, %s29
      %s32 = sadd.s32 1, %s21
      %s33 = scalar_select %p30, %s32, %s21
      %p34 = scmp.ge.s32.totalorder %s33, 1
      %s35 = scalar_select %p34, 0, %s33
      %s36 = sadd.s32 1, %s20
      %s37 = scalar_select %p34, %s36, %s20
      %p38 = scmp.ge.s32.totalorder %s37, 2
      %s39 = scalar_select %p38, 0, %s37
      %s40 = ssub.s32 %s20, %s39
      %s41 = ssub.s32 %s22, %s31
      %s42 = sor.u32 %s40, %s41
      %p43 = scmp.eq.s32.totalorder %s42, 0
      %s45 = sadd.s32 %s44, 1
      %s46 = scalar_select %p43, %s44, %s45
      %p49 = pneg %p43
      %p50 = scmp.eq.s32.totalorder %s13, 1
      %p51 = por %p49, %p50
      %p52 = scmp.ne.s32.totalorder %s44, %s47
      %p53 = scmp.eq.s32.totalorder %s13, 0
      %p54 = por %p52, %p53
      %p55 = scmp.ne.s32.totalorder %s44, %s47
      %p56 = scmp.eq.s32.totalorder %s18, 1
      %p57 = por %p55, %p56
      %p58 = scmp.ne.s32.totalorder %s47, %s48
      %p59 = scmp.eq.s32.totalorder %s18, 0
      %p60 = por %p58, %p59
      %p61 = scmp.ne.s32.totalorder %s47, %s48
      %p62 = scmp.eq.s32.totalorder %s19, 1
      %p63 = por %p61, %p62
      %p65 = scmp.ne.s32.totalorder %s48, %s64
      %p66 = scmp.eq.s32.totalorder %s19, 0
      %p67 = por %p65, %p66
      %s68 = ssub.s32 %s22, %s31
      %s69 = ssub.s32 %s21, %s35
      %s70 = sor.u32 %s68, %s69
      %p71 = scmp.eq.s32.totalorder %s70, 0
      %s73 = sadd.s32 %s72, 1
      %s74 = scalar_select %p71, %s72, %s73
      %p77 = pneg %p71
      %p78 = scmp.eq.s32.totalorder %s13, 1
      %p79 = por %p77, %p78
      %p80 = scmp.ne.s32.totalorder %s72, %s75
      %p81 = scmp.eq.s32.totalorder %s13, 0
      %p82 = por %p80, %p81
      %p83 = scmp.ne.s32.totalorder %s72, %s75
      %p84 = scmp.eq.s32.totalorder %s18, 1
      %p85 = por %p83, %p84
      %p86 = scmp.ne.s32.totalorder %s75, %s76
      %p87 = scmp.eq.s32.totalorder %s18, 0
      %p88 = por %p86, %p87
      %p89 = scmp.ne.s32.totalorder %s75, %s76
      %p90 = scmp.eq.s32.totalorder %s19, 1
      %p91 = por %p89, %p90
      %p93 = scmp.ne.s32.totalorder %s76, %s92
      %p94 = scmp.eq.s32.totalorder %s19, 0
      %p95 = por %p93, %p94
      %s96 = ssub.s32 %s21, %s35
      %p97 = scmp.eq.s32.totalorder %s96, 0
      %s99 = sadd.s32 %s98, 1
      %s100 = scalar_select %p97, %s98, %s99
      %p103 = pneg %p97
      %p104 = scmp.eq.s32.totalorder %s13, 1
      %p105 = por %p103, %p104
      %p106 = scmp.ne.s32.totalorder %s98, %s101
      %p107 = scmp.eq.s32.totalorder %s13, 0
      %p108 = por %p106, %p107
      %p109 = scmp.ne.s32.totalorder %s98, %s101
      %p110 = scmp.eq.s32.totalorder %s18, 1
      %p111 = por %p109, %p110
      %p112 = scmp.ne.s32.totalorder %s101, %s102
      %p113 = scmp.eq.s32.totalorder %s18, 0
      %p114 = por %p112, %p113
      %p115 = scmp.ne.s32.totalorder %s101, %s102
      %p116 = scmp.eq.s32.totalorder %s19, 1
      %p117 = por %p115, %p116
      %p119 = scmp.ne.s32.totalorder %s102, %s118
      %p120 = scmp.eq.s32.totalorder %s19, 0
      %p121 = por %p119, %p120
      %s122 = ssub.s32 %s21, %s35
      %p123 = scmp.eq.s32.totalorder %s122, 0
      %s125 = sadd.s32 %s124, 1
      %s126 = scalar_select %p123, %s124, %s125
      %p129 = pneg %p123
      %p130 = scmp.eq.s32.totalorder %s13, 1
      %p131 = por %p129, %p130
      %p132 = scmp.ne.s32.totalorder %s124, %s127
      %p133 = scmp.eq.s32.totalorder %s13, 0
      %p134 = por %p132, %p133
      %p135 = scmp.ne.s32.totalorder %s124, %s127
      %p136 = scmp.eq.s32.totalorder %s18, 1
      %p137 = por %p135, %p136
      %p138 = scmp.ne.s32.totalorder %s127, %s128
      %p139 = scmp.eq.s32.totalorder %s18, 0
      %p140 = por %p138, %p139
      %p141 = scmp.ne.s32.totalorder %s127, %s128
      %p142 = scmp.eq.s32.totalorder %s19, 1
      %p143 = por %p141, %p142
      %p145 = scmp.ne.s32.totalorder %s128, %s144
      %p146 = scmp.eq.s32.totalorder %s19, 0
      %p147 = por %p145, %p146
      %s148 = ssub.s32 %s20, %s39
      %s149 = ssub.s32 %s21, %s35
      %s150 = sor.u32 %s148, %s149
      %p151 = scmp.eq.s32.totalorder %s150, 0
      %s153 = sadd.s32 %s152, 1
      %s154 = scalar_select %p151, %s152, %s153
      %p157 = pneg %p151
      %p158 = scmp.eq.s32.totalorder %s13, 1
      %p159 = por %p157, %p158
      %p160 = scmp.ne.s32.totalorder %s152, %s155
      %p161 = scmp.eq.s32.totalorder %s13, 0
      %p162 = por %p160, %p161
      %p163 = scmp.ne.s32.totalorder %s152, %s155
      %p164 = scmp.eq.s32.totalorder %s18, 1
      %p165 = por %p163, %p164
      %p166 = scmp.ne.s32.totalorder %s155, %s156
      %p167 = scmp.eq.s32.totalorder %s18, 0
      %p168 = por %p166, %p167
      %p169 = scmp.ne.s32.totalorder %s155, %s156
      %p170 = scmp.eq.s32.totalorder %s19, 1
      %p171 = por %p169, %p170
      %p173 = scmp.ne.s32.totalorder %s156, %s172
      %p174 = scmp.eq.s32.totalorder %s19, 0
      %p175 = por %p173, %p174
      %p176 = scmp.le.s32.totalorder 1, %s13
      %p177 = scmp.lt.s32.totalorder %s13, 3
      %p178 = pnand %p176, %p177
      %p179 = pneg %p178
      // Predicated region
      $region9: #{tpu_custom_call.1} parent=5 // pred_check
        _
      $region10: #{tpu_custom_call.1} parent=5 // pred_check_branch
        %181 = sbr.rel (%p178) target = $region12
      $region11: #{tpu_custom_call.1} parent=5 // pred_region
        %s182 = ssub.s32 %s13, 1
        // Predicated region
        $region13: #{tpu_custom_call.1} parent=11 // pred_check
          %p183 = pneg %p88
        $region14: #{tpu_custom_call.1} parent=11 // pred_check_branch
          %185 = sbr.rel (%p183) target = $region16
        $region15: #{tpu_custom_call.1} parent=11 // pred_region
          %s186 = smul.u32 4, %s25
          %p187 = scmp.lt.s32.totalorder %s186, 3
          %s188 = scalar_select %p187, %s186, 3
          %p189 = scmp.lt.s32.totalorder %s24, 0
          %s190 = scalar_select %p189, %s24, 0
          %s191 = sadd.s32 %s190, %s188
          %s192 = smul.addr %s191, 4
          %s193 = scalar_lea.vmem %s1, %s192
          %s194 = smul.u32 4, %s25
        $region16: #{tpu_custom_call.1} parent=11 // pred_fallthru
          _
        // Predicated region
        $region17: #{tpu_custom_call.1} parent=11 // pred_check
          %p195 = pneg %p114
        $region18: #{tpu_custom_call.1} parent=11 // pred_check_branch
          %197 = sbr.rel (%p195) target = $region20
        $region19: #{tpu_custom_call.1} parent=11 // pred_region
          %p198 = scmp.lt.s32.totalorder %s24, 0
          %s199 = scalar_select %p198, %s24, 0
          %s200 = scalar_lea.vmem %s2, %s199
        $region20: #{tpu_custom_call.1} parent=11 // pred_fallthru
          _
        // Predicated region
        $region21: #{tpu_custom_call.1} parent=11 // pred_check
          %p201 = pneg %p140
        $region22: #{tpu_custom_call.1} parent=11 // pred_check_branch
          %203 = sbr.rel (%p201) target = $region24
        $region23: #{tpu_custom_call.1} parent=11 // pred_region
          %p204 = scmp.lt.s32.totalorder %s24, 0
          %s205 = scalar_select %p204, %s24, 0
          %s206 = scalar_lea.vmem %s3, %s205
        $region24: #{tpu_custom_call.1} parent=11 // pred_fallthru
          _
      $region12: #{tpu_custom_call.1} parent=5 // pred_fallthru
        _
      %p207 = scmp.lt.s32.totalorder %s13, 2
      // Predicated region
      $region25: #{tpu_custom_call.1} parent=5 // pred_check
        %p208 = pneg %p207
      $region26: #{tpu_custom_call.1} parent=5 // pred_check_branch
        %210 = sbr.rel (%p208) target = $region28
      $region27: #{tpu_custom_call.1} parent=5 // pred_region
        // Predicated region
        $region29: #{tpu_custom_call.1} parent=27 // pred_check
          %p211 = pneg %p54
        $region30: #{tpu_custom_call.1} parent=27 // pred_check_branch
          %213 = sbr.rel (%p211) target = $region32
        $region31: #{tpu_custom_call.1} parent=27 // pred_region
          %s214 = smul.u32 64, %s20
          %p215 = scmp.lt.s32.totalorder %s214, 127
          %s216 = scalar_select %p215, %s214, 127
          %p217 = scmp.lt.s32.totalorder %s22, 0
          %s218 = scalar_select %p217, %s22, 0
          %s219 = sadd.s32 %s218, %s216
          %s220 = smul.addr %s219, 4
          %s221 = scalar_lea.vmem %s0, %s220
          %s222 = smul.u32 64, %s20
        $region32: #{tpu_custom_call.1} parent=27 // pred_fallthru
          _
      $region28: #{tpu_custom_call.1} parent=5 // pred_fallthru
        _
      %p223 = scmp.le.s32.totalorder 1, %s13
      %p224 = scmp.lt.s32.totalorder %s13, 3
      %p225 = pnand %p223, %p224
      %p226 = pneg %p225
      // Predicated region
      $region33: #{tpu_custom_call.1} parent=5 // pred_check
        _
      $region34: #{tpu_custom_call.1} parent=5 // pred_check_branch
        %228 = sbr.rel (%p225) target = $region36
      $region35: #{tpu_custom_call.1} parent=5 // pred_region
        %s229 = ssub.s32 %s13, 1
        %s230 = smul.u32 64, %s23
        %p231 = scmp.lt.s32.totalorder %s230, 127
        %s232 = scalar_select %p231, %s230, 127
        %p233 = scmp.lt.s32.totalorder %s25, 0
        %s234 = scalar_select %p233, %s25, 0
        %s235 = sadd.s32 %s234, %s232
        %s236 = smul.addr %s235, 4
        %s237 = scalar_lea.vmem %s0, %s236
        %p238 = pneg %p60
        %p239 = pneg %p57
        %s240 = smul.u32 4, %s25
        %p241 = scmp.lt.s32.totalorder %s240, 3
        %s242 = scalar_select %p241, %s240, 3
        %p243 = scmp.lt.s32.totalorder %s24, 0
        %s244 = scalar_select %p243, %s24, 0
        %s245 = sadd.s32 %s244, %s242
        %s246 = smul.addr %s245, 4
        %s247 = scalar_lea.vmem %s1, %s246
        %p248 = pneg %p88
        %p249 = pneg %p85
        %p250 = scmp.lt.s32.totalorder %s24, 0
        %s251 = scalar_select %p250, %s24, 0
        %s252 = scalar_lea.vmem %s2, %s251
        %p253 = pneg %p114
        %p254 = pneg %p111
        %p255 = scmp.lt.s32.totalorder %s24, 0
        %s256 = scalar_select %p255, %s24, 0
        %s257 = scalar_lea.vmem %s3, %s256
        %p258 = pneg %p140
        %p259 = pneg %p137
        %p260 = pneg %p168
        %p261 = pneg %p165
        %s262 = sand.u32 %s155, 1
        %s263 = scalar_lea.sflag [#allocation4], %s262
        %s264 = sand.u32 %s155, 1
        %s265 = smul.addr %s264, 256
        %s266 = scalar_lea.vmem [#allocation3], %s265
        %s267 = smul.u32 64, %s23
        %p268 = scmp.lt.s32.totalorder %s267, 127
        %s269 = scalar_select %p268, %s267, 127
        %p270 = scmp.lt.s32.totalorder %s25, 0
        %s271 = scalar_select %p270, %s25, 0
        %s272 = sadd.s32 %s271, %s269
        %s273 = smul.addr %s272, 4
        %s274 = scalar_lea.vmem %s0, %s273
        %s275 = smul.u32 64, %s23
        %s276 = smul.u32 4, %s25
        %p277 = scmp.lt.s32.totalorder %s276, 3
        %s278 = scalar_select %p277, %s276, 3
        %p279 = scmp.lt.s32.totalorder %s24, 0
        %s280 = scalar_select %p279, %s24, 0
        %s281 = sadd.s32 %s280, %s278
        %s282 = smul.addr %s281, 4
        %s283 = scalar_lea.vmem %s1, %s282
        %s284 = smul.u32 4, %s25
        %p285 = scmp.lt.s32.totalorder %s24, 0
        %s286 = scalar_select %p285, %s24, 0
        %s287 = scalar_lea.vmem %s2, %s286
        %p288 = scmp.lt.s32.totalorder %s24, 0
        %s289 = scalar_select %p288, %s24, 0
        %s290 = scalar_lea.vmem %s3, %s289
        %s291 = smul.u32 64, %s23
        %p293 = scmp.eq.s32.totalorder %s25, 0
        // Predicated region
        $region37: #{tpu_custom_call.1} parent=35 // pred_check
          %p294 = pneg %p293
        $region38: #{tpu_custom_call.1} parent=35 // pred_check_branch
          %296 = sbr.rel (%p294) target = $region40
        $region39: #{tpu_custom_call.1} parent=35 // pred_region
          %297 = vst [vmem:[#allocation2] sm:$0xff] 0.0
          %298 = vst [vmem:[#allocation2 + $0x8] sm:$0xff] 0.0
          %299 = vst [vmem:[#allocation2 + $0x10] sm:$0xff] 0.0
          %300 = vst [vmem:[#allocation2 + $0x18] sm:$0xff] 0.0
          %301 = vst [vmem:[#allocation2 + $0x20] sm:$0xff] 0.0
          %302 = vst [vmem:[#allocation2 + $0x28] sm:$0xff] 0.0
          %303 = vst [vmem:[#allocation2 + $0x30] sm:$0xff] 0.0
          %304 = vst [vmem:[#allocation2 + $0x38] sm:$0xff] 0.0
          %305 = vst [vmem:[#allocation2 + $0x40] sm:$0xff] 0.0
          %306 = vst [vmem:[#allocation2 + $0x48] sm:$0xff] 0.0
          %307 = vst [vmem:[#allocation2 + $0x50] sm:$0xff] 0.0
          %308 = vst [vmem:[#allocation2 + $0x58] sm:$0xff] 0.0
          %309 = vst [vmem:[#allocation2 + $0x60] sm:$0xff] 0.0
          %310 = vst [vmem:[#allocation2 + $0x68] sm:$0xff] 0.0
          %311 = vst [vmem:[#allocation2 + $0x70] sm:$0xff] 0.0
          %312 = vst [vmem:[#allocation2 + $0x78] sm:$0xff] 0.0
          %313 = vst [vmem:[#allocation2 + $0x80] sm:$0xff] 0.0
          %314 = vst [vmem:[#allocation2 + $0x88] sm:$0xff] 0.0
          %315 = vst [vmem:[#allocation2 + $0x90] sm:$0xff] 0.0
          %316 = vst [vmem:[#allocation2 + $0x98] sm:$0xff] 0.0
          %317 = vst [vmem:[#allocation2 + $0xa0] sm:$0xff] 0.0
          %318 = vst [vmem:[#allocation2 + $0xa8] sm:$0xff] 0.0
          %319 = vst [vmem:[#allocation2 + $0xb0] sm:$0xff] 0.0
          %320 = vst [vmem:[#allocation2 + $0xb8] sm:$0xff] 0.0
          %321 = vst [vmem:[#allocation2 + $0xc0] sm:$0xff] 0.0
          %322 = vst [vmem:[#allocation2 + $0xc8] sm:$0xff] 0.0
          %323 = vst [vmem:[#allocation2 + $0xd0] sm:$0xff] 0.0
          %324 = vst [vmem:[#allocation2 + $0xd8] sm:$0xff] 0.0
          %325 = vst [vmem:[#allocation2 + $0xe0] sm:$0xff] 0.0
          %326 = vst [vmem:[#allocation2 + $0xe8] sm:$0xff] 0.0
          %327 = vst [vmem:[#allocation2 + $0xf0] sm:$0xff] 0.0
          %328 = vst [vmem:[#allocation2 + $0xf8] sm:$0xff] 0.0
          %329 = vst [vmem:[#allocation2 + $0x100] sm:$0xff] 0.0
          %330 = vst [vmem:[#allocation2 + $0x108] sm:$0xff] 0.0
          %331 = vst [vmem:[#allocation2 + $0x110] sm:$0xff] 0.0
          %332 = vst [vmem:[#allocation2 + $0x118] sm:$0xff] 0.0
          %333 = vst [vmem:[#allocation2 + $0x120] sm:$0xff] 0.0
          %334 = vst [vmem:[#allocation2 + $0x128] sm:$0xff] 0.0
          %335 = vst [vmem:[#allocation2 + $0x130] sm:$0xff] 0.0
          %336 = vst [vmem:[#allocation2 + $0x138] sm:$0xff] 0.0
          %337 = vst [vmem:[#allocation2 + $0x140] sm:$0xff] 0.0
          %338 = vst [vmem:[#allocation2 + $0x148] sm:$0xff] 0.0
          %339 = vst [vmem:[#allocation2 + $0x150] sm:$0xff] 0.0
          %340 = vst [vmem:[#allocation2 + $0x158] sm:$0xff] 0.0
          %341 = vst [vmem:[#allocation2 + $0x160] sm:$0xff] 0.0
          %342 = vst [vmem:[#allocation2 + $0x168] sm:$0xff] 0.0
          %343 = vst [vmem:[#allocation2 + $0x170] sm:$0xff] 0.0
          %344 = vst [vmem:[#allocation2 + $0x178] sm:$0xff] 0.0
          %345 = vst [vmem:[#allocation2 + $0x180] sm:$0xff] 0.0
          %346 = vst [vmem:[#allocation2 + $0x188] sm:$0xff] 0.0
          %347 = vst [vmem:[#allocation2 + $0x190] sm:$0xff] 0.0
          %348 = vst [vmem:[#allocation2 + $0x198] sm:$0xff] 0.0
          %349 = vst [vmem:[#allocation2 + $0x1a0] sm:$0xff] 0.0
          %350 = vst [vmem:[#allocation2 + $0x1a8] sm:$0xff] 0.0
          %351 = vst [vmem:[#allocation2 + $0x1b0] sm:$0xff] 0.0
          %352 = vst [vmem:[#allocation2 + $0x1b8] sm:$0xff] 0.0
          %353 = vst [vmem:[#allocation2 + $0x1c0] sm:$0xff] 0.0
          %354 = vst [vmem:[#allocation2 + $0x1c8] sm:$0xff] 0.0
          %355 = vst [vmem:[#allocation2 + $0x1d0] sm:$0xff] 0.0
          %356 = vst [vmem:[#allocation2 + $0x1d8] sm:$0xff] 0.0
          %357 = vst [vmem:[#allocation2 + $0x1e0] sm:$0xff] 0.0
          %358 = vst [vmem:[#allocation2 + $0x1e8] sm:$0xff] 0.0
          %359 = vst [vmem:[#allocation2 + $0x1f0] sm:$0xff] 0.0
          %360 = vst [vmem:[#allocation2 + $0x1f8] sm:$0xff] 0.0
        $region40: #{tpu_custom_call.1} parent=35 // pred_fallthru
          _
        %v361 = vld [vmem:[#allocation2] sm:$0xff]
        %v362 = vld [vmem:[#allocation2 + $0x8] sm:$0xff]
        %v363 = vld [vmem:[#allocation2 + $0x10] sm:$0xff]
        %v364 = vld [vmem:[#allocation2 + $0x18] sm:$0xff]
        %v365 = vld [vmem:[#allocation2 + $0x20] sm:$0xff]
        %v366 = vld [vmem:[#allocation2 + $0x28] sm:$0xff]
        %v367 = vld [vmem:[#allocation2 + $0x30] sm:$0xff]
        %v368 = vld [vmem:[#allocation2 + $0x38] sm:$0xff]
        %v369 = vld [vmem:[#allocation2 + $0x40] sm:$0xff]
        %v370 = vld [vmem:[#allocation2 + $0x48] sm:$0xff]
        %v371 = vld [vmem:[#allocation2 + $0x50] sm:$0xff]
        %v372 = vld [vmem:[#allocation2 + $0x58] sm:$0xff]
        %v373 = vld [vmem:[#allocation2 + $0x60] sm:$0xff]
        %v374 = vld [vmem:[#allocation2 + $0x68] sm:$0xff]
        %v375 = vld [vmem:[#allocation2 + $0x70] sm:$0xff]
        %v376 = vld [vmem:[#allocation2 + $0x78] sm:$0xff]
        %v377 = vld [vmem:[#allocation2 + $0x80] sm:$0xff]
        %v378 = vld [vmem:[#allocation2 + $0x88] sm:$0xff]
        %v379 = vld [vmem:[#allocation2 + $0x90] sm:$0xff]
        %v380 = vld [vmem:[#allocation2 + $0x98] sm:$0xff]
        %v381 = vld [vmem:[#allocation2 + $0xa0] sm:$0xff]
        %v382 = vld [vmem:[#allocation2 + $0xa8] sm:$0xff]
        %v383 = vld [vmem:[#allocation2 + $0xb0] sm:$0xff]
        %v384 = vld [vmem:[#allocation2 + $0xb8] sm:$0xff]
        %v385 = vld [vmem:[#allocation2 + $0xc0] sm:$0xff]
        %v386 = vld [vmem:[#allocation2 + $0xc8] sm:$0xff]
        %v387 = vld [vmem:[#allocation2 + $0xd0] sm:$0xff]
        %v388 = vld [vmem:[#allocation2 + $0xd8] sm:$0xff]
        %v389 = vld [vmem:[#allocation2 + $0xe0] sm:$0xff]
        %v390 = vld [vmem:[#allocation2 + $0xe8] sm:$0xff]
        %v391 = vld [vmem:[#allocation2 + $0xf0] sm:$0xff]
        %v392 = vld [vmem:[#allocation2 + $0xf8] sm:$0xff]
        %v393 = vld [vmem:[#allocation2 + $0x100] sm:$0xff]
        %v394 = vld [vmem:[#allocation2 + $0x108] sm:$0xff]
        %v395 = vld [vmem:[#allocation2 + $0x110] sm:$0xff]
        %v396 = vld [vmem:[#allocation2 + $0x118] sm:$0xff]
        %v397 = vld [vmem:[#allocation2 + $0x120] sm:$0xff]
        %v398 = vld [vmem:[#allocation2 + $0x128] sm:$0xff]
        %v399 = vld [vmem:[#allocation2 + $0x130] sm:$0xff]
        %v400 = vld [vmem:[#allocation2 + $0x138] sm:$0xff]
        %v401 = vld [vmem:[#allocation2 + $0x140] sm:$0xff]
        %v402 = vld [vmem:[#allocation2 + $0x148] sm:$0xff]
        %v403 = vld [vmem:[#allocation2 + $0x150] sm:$0xff]
        %v404 = vld [vmem:[#allocation2 + $0x158] sm:$0xff]
        %v405 = vld [vmem:[#allocation2 + $0x160] sm:$0xff]
        %v406 = vld [vmem:[#allocation2 + $0x168] sm:$0xff]
        %v407 = vld [vmem:[#allocation2 + $0x170] sm:$0xff]
        %v408 = vld [vmem:[#allocation2 + $0x178] sm:$0xff]
        %v409 = vld [vmem:[#allocation2 + $0x180] sm:$0xff]
        %v410 = vld [vmem:[#allocation2 + $0x188] sm:$0xff]
        %v411 = vld [vmem:[#allocation2 + $0x190] sm:$0xff]
        %v412 = vld [vmem:[#allocation2 + $0x198] sm:$0xff]
        %v413 = vld [vmem:[#allocation2 + $0x1a0] sm:$0xff]
        %v414 = vld [vmem:[#allocation2 + $0x1a8] sm:$0xff]
        %v415 = vld [vmem:[#allocation2 + $0x1b0] sm:$0xff]
        %v416 = vld [vmem:[#allocation2 + $0x1b8] sm:$0xff]
        %v417 = vld [vmem:[#allocation2 + $0x1c0] sm:$0xff]
        %v418 = vld [vmem:[#allocation2 + $0x1c8] sm:$0xff]
        %v419 = vld [vmem:[#allocation2 + $0x1d0] sm:$0xff]
        %v420 = vld [vmem:[#allocation2 + $0x1d8] sm:$0xff]
        %v421 = vld [vmem:[#allocation2 + $0x1e0] sm:$0xff]
        %v422 = vld [vmem:[#allocation2 + $0x1e8] sm:$0xff]
        %v423 = vld [vmem:[#allocation2 + $0x1f0] sm:$0xff]
        %v424 = vld [vmem:[#allocation2 + $0x1f8] sm:$0xff]
        %v425 = vld [vmem:[%s274] sm:$0xf]
        %v426 = vld [vmem:[%s274 + $0x4] sm:$0xf]
        %v427 = vld [vmem:[%s274 + $0x8] sm:$0xf]
        %v428 = vld [vmem:[%s274 + $0xc] sm:$0xf]
        %v429 = vld [vmem:[%s274 + $0x10] sm:$0xf]
        %v430 = vld [vmem:[%s274 + $0x14] sm:$0xf]
        %v431 = vld [vmem:[%s274 + $0x18] sm:$0xf]
        %v432 = vld [vmem:[%s274 + $0x1c] sm:$0xf]
        %v433 = vld [vmem:[%s274 + $0x20] sm:$0xf]
        %v434 = vld [vmem:[%s274 + $0x24] sm:$0xf]
        %v435 = vld [vmem:[%s274 + $0x28] sm:$0xf]
        %v436 = vld [vmem:[%s274 + $0x2c] sm:$0xf]
        %v437 = vld [vmem:[%s274 + $0x30] sm:$0xf]
        %v438 = vld [vmem:[%s274 + $0x34] sm:$0xf]
        %v439 = vld [vmem:[%s274 + $0x38] sm:$0xf]
        %v440 = vld [vmem:[%s274 + $0x3c] sm:$0xf]
        %v441 = vld [vmem:[%s274 + $0x40] sm:$0xf]
        %v442 = vld [vmem:[%s274 + $0x44] sm:$0xf]
        %v443 = vld [vmem:[%s274 + $0x48] sm:$0xf]
        %v444 = vld [vmem:[%s274 + $0x4c] sm:$0xf]
        %v445 = vld [vmem:[%s274 + $0x50] sm:$0xf]
        %v446 = vld [vmem:[%s274 + $0x54] sm:$0xf]
        %v447 = vld [vmem:[%s274 + $0x58] sm:$0xf]
        %v448 = vld [vmem:[%s274 + $0x5c] sm:$0xf]
        %v449 = vld [vmem:[%s274 + $0x60] sm:$0xf]
        %v450 = vld [vmem:[%s274 + $0x64] sm:$0xf]
        %v451 = vld [vmem:[%s274 + $0x68] sm:$0xf]
        %v452 = vld [vmem:[%s274 + $0x6c] sm:$0xf]
        %v453 = vld [vmem:[%s274 + $0x70] sm:$0xf]
        %v454 = vld [vmem:[%s274 + $0x74] sm:$0xf]
        %v455 = vld [vmem:[%s274 + $0x78] sm:$0xf]
        %v456 = vld [vmem:[%s274 + $0x7c] sm:$0xf]
        %v457 = vld [vmem:[%s274 + $0x80] sm:$0xf]
        %v458 = vld [vmem:[%s274 + $0x84] sm:$0xf]
        %v459 = vld [vmem:[%s274 + $0x88] sm:$0xf]
        %v460 = vld [vmem:[%s274 + $0x8c] sm:$0xf]
        %v461 = vld [vmem:[%s274 + $0x90] sm:$0xf]
        %v462 = vld [vmem:[%s274 + $0x94] sm:$0xf]
        %v463 = vld [vmem:[%s274 + $0x98] sm:$0xf]
        %v464 = vld [vmem:[%s274 + $0x9c] sm:$0xf]
        %v465 = vld [vmem:[%s274 + $0xa0] sm:$0xf]
        %v466 = vld [vmem:[%s274 + $0xa4] sm:$0xf]
        %v467 = vld [vmem:[%s274 + $0xa8] sm:$0xf]
        %v468 = vld [vmem:[%s274 + $0xac] sm:$0xf]
        %v469 = vld [vmem:[%s274 + $0xb0] sm:$0xf]
        %v470 = vld [vmem:[%s274 + $0xb4] sm:$0xf]
        %v471 = vld [vmem:[%s274 + $0xb8] sm:$0xf]
        %v472 = vld [vmem:[%s274 + $0xbc] sm:$0xf]
        %v473 = vld [vmem:[%s274 + $0xc0] sm:$0xf]
        %v474 = vld [vmem:[%s274 + $0xc4] sm:$0xf]
        %v475 = vld [vmem:[%s274 + $0xc8] sm:$0xf]
        %v476 = vld [vmem:[%s274 + $0xcc] sm:$0xf]
        %v477 = vld [vmem:[%s274 + $0xd0] sm:$0xf]
        %v478 = vld [vmem:[%s274 + $0xd4] sm:$0xf]
        %v479 = vld [vmem:[%s274 + $0xd8] sm:$0xf]
        %v480 = vld [vmem:[%s274 + $0xdc] sm:$0xf]
        %v481 = vld [vmem:[%s274 + $0xe0] sm:$0xf]
        %v482 = vld [vmem:[%s274 + $0xe4] sm:$0xf]
        %v483 = vld [vmem:[%s274 + $0xe8] sm:$0xf]
        %v484 = vld [vmem:[%s274 + $0xec] sm:$0xf]
        %v485 = vld [vmem:[%s274 + $0xf0] sm:$0xf]
        %v486 = vld [vmem:[%s274 + $0xf4] sm:$0xf]
        %v487 = vld [vmem:[%s274 + $0xf8] sm:$0xf]
        %v488 = vld [vmem:[%s274 + $0xfc] sm:$0xf]
        %v489 = vld [vmem:[%s283] sm:$0xf]
        %v490 = vld [vmem:[%s283 + $0x4] sm:$0xf]
        %v491 = vld [vmem:[%s283 + $0x8] sm:$0xf]
        %v492 = vld [vmem:[%s283 + $0xc] sm:$0x3]
        %v557 = vunpack.c.l.b16 %v425
        %v558 = vunpack.c.l.b16 %v426
        %v559 = vunpack.c.l.b16 %v427
        %v560 = vunpack.c.l.b16 %v428
        %v561 = vunpack.c.l.b16 %v429
        %v562 = vunpack.c.l.b16 %v430
        %v563 = vunpack.c.l.b16 %v431
        %v564 = vunpack.c.l.b16 %v432
        %v565 = vunpack.c.l.b16 %v433
        %v566 = vunpack.c.l.b16 %v434
        %v567 = vunpack.c.l.b16 %v435
        %v568 = vunpack.c.l.b16 %v436
        %v569 = vunpack.c.l.b16 %v437
        %v570 = vunpack.c.l.b16 %v438
        %v571 = vunpack.c.l.b16 %v439
        %v572 = vunpack.c.l.b16 %v440
        %v573 = vunpack.c.l.b16 %v441
        %v574 = vunpack.c.l.b16 %v442
        %v575 = vunpack.c.l.b16 %v443
        %v576 = vunpack.c.l.b16 %v444
        %v577 = vunpack.c.l.b16 %v445
        %v578 = vunpack.c.l.b16 %v446
        %v579 = vunpack.c.l.b16 %v447
        %v580 = vunpack.c.l.b16 %v448
        %v581 = vunpack.c.l.b16 %v449
        %v582 = vunpack.c.l.b16 %v450
        %v583 = vunpack.c.l.b16 %v451
        %v584 = vunpack.c.l.b16 %v452
        %v585 = vunpack.c.l.b16 %v453
        %v586 = vunpack.c.l.b16 %v454
        %v587 = vunpack.c.l.b16 %v455
        %v588 = vunpack.c.l.b16 %v456
        %v589 = vunpack.c.l.b16 %v457
        %v590 = vunpack.c.l.b16 %v458
        %v591 = vunpack.c.l.b16 %v459
        %v592 = vunpack.c.l.b16 %v460
        %v593 = vunpack.c.l.b16 %v461
        %v594 = vunpack.c.l.b16 %v462
        %v595 = vunpack.c.l.b16 %v463
        %v596 = vunpack.c.l.b16 %v464
        %v597 = vunpack.c.l.b16 %v465
        %v598 = vunpack.c.l.b16 %v466
        %v599 = vunpack.c.l.b16 %v467
        %v600 = vunpack.c.l.b16 %v468
        %v601 = vunpack.c.l.b16 %v469
        %v602 = vunpack.c.l.b16 %v470
        %v603 = vunpack.c.l.b16 %v471
        %v604 = vunpack.c.l.b16 %v472
        %v605 = vunpack.c.l.b16 %v473
        %v606 = vunpack.c.l.b16 %v474
        %v607 = vunpack.c.l.b16 %v475
        %v608 = vunpack.c.l.b16 %v476
        %v609 = vunpack.c.l.b16 %v477
        %v610 = vunpack.c.l.b16 %v478
        %v611 = vunpack.c.l.b16 %v479
        %v612 = vunpack.c.l.b16 %v480
        %v613 = vunpack.c.l.b16 %v481
        %v614 = vunpack.c.l.b16 %v482
        %v615 = vunpack.c.l.b16 %v483
        %v616 = vunpack.c.l.b16 %v484
        %v617 = vunpack.c.l.b16 %v485
        %v618 = vunpack.c.l.b16 %v486
        %v619 = vunpack.c.l.b16 %v487
        %v620 = vunpack.c.l.b16 %v488
        %v621 = vpack.c.b16 %v558, %v557
        %v622 = vpack.c.b16 %v560, %v559
        %v623 = vpack.c.b16 %v562, %v561
        %v624 = vpack.c.b16 %v564, %v563
        %v625 = vpack.c.b16 %v566, %v565
        %v626 = vpack.c.b16 %v568, %v567
        %v627 = vpack.c.b16 %v570, %v569
        %v628 = vpack.c.b16 %v572, %v571
        %v629 = vpack.c.b16 %v574, %v573
        %v630 = vpack.c.b16 %v576, %v575
        %v631 = vpack.c.b16 %v578, %v577
        %v632 = vpack.c.b16 %v580, %v579
        %v633 = vpack.c.b16 %v582, %v581
        %v634 = vpack.c.b16 %v584, %v583
        %v635 = vpack.c.b16 %v586, %v585
        %v636 = vpack.c.b16 %v588, %v587
        %v637 = vpack.c.b16 %v590, %v589
        %v638 = vpack.c.b16 %v592, %v591
        %v639 = vpack.c.b16 %v594, %v593
        %v640 = vpack.c.b16 %v596, %v595
        %v641 = vpack.c.b16 %v598, %v597
        %v642 = vpack.c.b16 %v600, %v599
        %v643 = vpack.c.b16 %v602, %v601
        %v644 = vpack.c.b16 %v604, %v603
        %v645 = vpack.c.b16 %v606, %v605
        %v646 = vpack.c.b16 %v608, %v607
        %v647 = vpack.c.b16 %v610, %v609
        %v648 = vpack.c.b16 %v612, %v611
        %v649 = vpack.c.b16 %v614, %v613
        %v650 = vpack.c.b16 %v616, %v615
        %v651 = vpack.c.b16 %v618, %v617
        %v652 = vpack.c.b16 %v620, %v619
        %v657 = vunpack.c.l.b16 %v489
        %v658 = vunpack.c.l.b16 %v490
        %v659 = vunpack.c.l.b16 %v491
        %v660 = vunpack.c.l.b16 %v492
        %v661 = vpack.c.b16 %v658, %v657
        %v662 = vpack.c.b16 %v660, %v659
        %vm664 = vcmask 220160
        %v666 = vsel %vm664, %v621, 0
        %v669 = vsel %vm664, %v622, 0
        %v672 = vsel %vm664, %v623, 0
        %v675 = vsel %vm664, %v624, 0
        %v678 = vsel %vm664, %v625, 0
        %v681 = vsel %vm664, %v626, 0
        %v684 = vsel %vm664, %v627, 0
        %v687 = vsel %vm664, %v628, 0
        %v690 = vsel %vm664, %v629, 0
        %v693 = vsel %vm664, %v630, 0
        %v696 = vsel %vm664, %v631, 0
        %v699 = vsel %vm664, %v632, 0
        %v702 = vsel %vm664, %v633, 0
        %v705 = vsel %vm664, %v634, 0
        %v708 = vsel %vm664, %v635, 0
        %v711 = vsel %vm664, %v636, 0
        %v714 = vsel %vm664, %v637, 0
        %v717 = vsel %vm664, %v638, 0
        %v720 = vsel %vm664, %v639, 0
        %v723 = vsel %vm664, %v640, 0
        %v726 = vsel %vm664, %v641, 0
        %v729 = vsel %vm664, %v642, 0
        %v732 = vsel %vm664, %v643, 0
        %v735 = vsel %vm664, %v644, 0
        %v738 = vsel %vm664, %v645, 0
        %v741 = vsel %vm664, %v646, 0
        %v744 = vsel %vm664, %v647, 0
        %v747 = vsel %vm664, %v648, 0
        %v750 = vsel %vm664, %v649, 0
        %v753 = vsel %vm664, %v650, 0
        %v756 = vsel %vm664, %v651, 0
        %v759 = vsel %vm664, %v652, 0
        %vm761 = vcmask 1044480
        %vm762 = vcmask 1045504
        %v763 = vsel %vm761, 4294967295, 65535
        %v764 = vsel %vm762, %v763, 0
        %v766 = vand.u32 %v662, %v764
        %768 = vmatpush.bf16.msra.mxu0 0
        %769 = vmatpush.bf16.msra.mxu0 0
        %770 = vmatpush.bf16.msra.mxu0 0
        %771 = vmatpush.bf16.msra.mxu0 0
        %772 = vmatpush.bf16.msra.mxu0 0
        %773 = vmatpush.bf16.msra.mxu0 0
        %774 = vmatpush.bf16.msra.mxu0 %v766
        %775 = vmatpush.bf16.msra.mxu0 %v661
        %776 = vmatmul.bf16.gmra.mxu0 %v666
        %v777 = vpop.f32.mrf.mxu0
        %v778 = vadd.f32 0.0, %v777
        %v779 = vpop.f32.mrf.mxu0
        %v780 = vadd.f32 0.0, %v779
        %781 = vmatmul.bf16.gmra.mxu0 %v669
        %v782 = vpop.f32.mrf.mxu0
        %v783 = vadd.f32 0.0, %v782
        %v784 = vpop.f32.mrf.mxu0
        %v785 = vadd.f32 0.0, %v784
        %786 = vmatmul.bf16.gmra.mxu0 %v672
        %v787 = vpop.f32.mrf.mxu0
        %v788 = vadd.f32 0.0, %v787
        %v789 = vpop.f32.mrf.mxu0
        %v790 = vadd.f32 0.0, %v789
        %791 = vmatmul.bf16.gmra.mxu0 %v675
        %v792 = vpop.f32.mrf.mxu0
        %v793 = vadd.f32 0.0, %v792
        %v794 = vpop.f32.mrf.mxu0
        %v795 = vadd.f32 0.0, %v794
        %796 = vmatmul.bf16.gmra.mxu0 %v678
        %v797 = vpop.f32.mrf.mxu0
        %v798 = vadd.f32 0.0, %v797
        %v799 = vpop.f32.mrf.mxu0
        %v800 = vadd.f32 0.0, %v799
        %801 = vmatmul.bf16.gmra.mxu0 %v681
        %v802 = vpop.f32.mrf.mxu0
        %v803 = vadd.f32 0.0, %v802
        %v804 = vpop.f32.mrf.mxu0
        %v805 = vadd.f32 0.0, %v804
        %806 = vmatmul.bf16.gmra.mxu0 %v684
        %v807 = vpop.f32.mrf.mxu0
        %v808 = vadd.f32 0.0, %v807
        %v809 = vpop.f32.mrf.mxu0
        %v810 = vadd.f32 0.0, %v809
        %811 = vmatmul.bf16.gmra.mxu0 %v687
        %v812 = vpop.f32.mrf.mxu0
        %v813 = vadd.f32 0.0, %v812
        %v814 = vpop.f32.mrf.mxu0
        %v815 = vadd.f32 0.0, %v814
        %816 = vmatmul.bf16.gmra.mxu0 %v690
        %v817 = vpop.f32.mrf.mxu0
        %v818 = vadd.f32 0.0, %v817
        %v819 = vpop.f32.mrf.mxu0
        %v820 = vadd.f32 0.0, %v819
        %821 = vmatmul.bf16.gmra.mxu0 %v693
        %v822 = vpop.f32.mrf.mxu0
        %v823 = vadd.f32 0.0, %v822
        %v824 = vpop.f32.mrf.mxu0
        %v825 = vadd.f32 0.0, %v824
        %826 = vmatmul.bf16.gmra.mxu0 %v696
        %v827 = vpop.f32.mrf.mxu0
        %v828 = vadd.f32 0.0, %v827
        %v829 = vpop.f32.mrf.mxu0
        %v830 = vadd.f32 0.0, %v829
        %831 = vmatmul.bf16.gmra.mxu0 %v699
        %v832 = vpop.f32.mrf.mxu0
        %v833 = vadd.f32 0.0, %v832
        %v834 = vpop.f32.mrf.mxu0
        %v835 = vadd.f32 0.0, %v834
        %836 = vmatmul.bf16.gmra.mxu0 %v702
        %v837 = vpop.f32.mrf.mxu0
        %v838 = vadd.f32 0.0, %v837
        %v839 = vpop.f32.mrf.mxu0
        %v840 = vadd.f32 0.0, %v839
        %841 = vmatmul.bf16.gmra.mxu0 %v705
        %v842 = vpop.f32.mrf.mxu0
        %v843 = vadd.f32 0.0, %v842
        %v844 = vpop.f32.mrf.mxu0
        %v845 = vadd.f32 0.0, %v844
        %846 = vmatmul.bf16.gmra.mxu0 %v708
        %v847 = vpop.f32.mrf.mxu0
        %v848 = vadd.f32 0.0, %v847
        %v849 = vpop.f32.mrf.mxu0
        %v850 = vadd.f32 0.0, %v849
        %851 = vmatmul.bf16.gmra.mxu0 %v711
        %v852 = vpop.f32.mrf.mxu0
        %v853 = vadd.f32 0.0, %v852
        %v854 = vpop.f32.mrf.mxu0
        %v855 = vadd.f32 0.0, %v854
        %856 = vmatmul.bf16.gmra.mxu0 %v714
        %v857 = vpop.f32.mrf.mxu0
        %v858 = vadd.f32 0.0, %v857
        %v859 = vpop.f32.mrf.mxu0
        %v860 = vadd.f32 0.0, %v859
        %861 = vmatmul.bf16.gmra.mxu0 %v717
        %v862 = vpop.f32.mrf.mxu0
        %v863 = vadd.f32 0.0, %v862
        %v864 = vpop.f32.mrf.mxu0
        %v865 = vadd.f32 0.0, %v864
        %866 = vmatmul.bf16.gmra.mxu0 %v720
        %v867 = vpop.f32.mrf.mxu0
        %v868 = vadd.f32 0.0, %v867
        %v869 = vpop.f32.mrf.mxu0
        %v870 = vadd.f32 0.0, %v869
        %871 = vmatmul.bf16.gmra.mxu0 %v723
        %v872 = vpop.f32.mrf.mxu0
        %v873 = vadd.f32 0.0, %v872
        %v874 = vpop.f32.mrf.mxu0
        %v875 = vadd.f32 0.0, %v874
        %876 = vmatmul.bf16.gmra.mxu0 %v726
        %v877 = vpop.f32.mrf.mxu0
        %v878 = vadd.f32 0.0, %v877
        %v879 = vpop.f32.mrf.mxu0
        %v880 = vadd.f32 0.0, %v879
        %881 = vmatmul.bf16.gmra.mxu0 %v729
        %v882 = vpop.f32.mrf.mxu0
        %v883 = vadd.f32 0.0, %v882
        %v884 = vpop.f32.mrf.mxu0
        %v885 = vadd.f32 0.0, %v884
        %886 = vmatmul.bf16.gmra.mxu0 %v732
        %v887 = vpop.f32.mrf.mxu0
        %v888 = vadd.f32 0.0, %v887
        %v889 = vpop.f32.mrf.mxu0
        %v890 = vadd.f32 0.0, %v889
        %891 = vmatmul.bf16.gmra.mxu0 %v735
        %v892 = vpop.f32.mrf.mxu0
        %v893 = vadd.f32 0.0, %v892
        %v894 = vpop.f32.mrf.mxu0
        %v895 = vadd.f32 0.0, %v894
        %896 = vmatmul.bf16.gmra.mxu0 %v738
        %v897 = vpop.f32.mrf.mxu0
        %v898 = vadd.f32 0.0, %v897
        %v899 = vpop.f32.mrf.mxu0
        %v900 = vadd.f32 0.0, %v899
        %901 = vmatmul.bf16.gmra.mxu0 %v741
        %v902 = vpop.f32.mrf.mxu0
        %v903 = vadd.f32 0.0, %v902
        %v904 = vpop.f32.mrf.mxu0
        %v905 = vadd.f32 0.0, %v904
        %906 = vmatmul.bf16.gmra.mxu0 %v744
        %v907 = vpop.f32.mrf.mxu0
        %v908 = vadd.f32 0.0, %v907
        %v909 = vpop.f32.mrf.mxu0
        %v910 = vadd.f32 0.0, %v909
        %911 = vmatmul.bf16.gmra.mxu0 %v747
        %v912 = vpop.f32.mrf.mxu0
        %v913 = vadd.f32 0.0, %v912
        %v914 = vpop.f32.mrf.mxu0
        %v915 = vadd.f32 0.0, %v914
        %916 = vmatmul.bf16.gmra.mxu0 %v750
        %v917 = vpop.f32.mrf.mxu0
        %v918 = vadd.f32 0.0, %v917
        %v919 = vpop.f32.mrf.mxu0
        %v920 = vadd.f32 0.0, %v919
        %921 = vmatmul.bf16.gmra.mxu0 %v753
        %v922 = vpop.f32.mrf.mxu0
        %v923 = vadd.f32 0.0, %v922
        %v924 = vpop.f32.mrf.mxu0
        %v925 = vadd.f32 0.0, %v924
        %926 = vmatmul.bf16.gmra.mxu0 %v756
        %v927 = vpop.f32.mrf.mxu0
        %v928 = vadd.f32 0.0, %v927
        %v929 = vpop.f32.mrf.mxu0
        %v930 = vadd.f32 0.0, %v929
        %931 = vmatmul.bf16.gmra.mxu0 %v759
        %v932 = vpop.f32.mrf.mxu0
        %v933 = vadd.f32 0.0, %v932
        %v934 = vpop.f32.mrf.mxu0
        %v935 = vadd.f32 0.0, %v934
        %936 = vdwg.mxu0
        %v937 = vadd.f32 %v361, %v778
        %v938 = vadd.f32 %v362, %v780
        %v939 = vadd.f32 %v363, %v783
        %v940 = vadd.f32 %v364, %v785
        %v941 = vadd.f32 %v365, %v788
        %v942 = vadd.f32 %v366, %v790
        %v943 = vadd.f32 %v367, %v793
        %v944 = vadd.f32 %v368, %v795
        %v945 = vadd.f32 %v369, %v798
        %v946 = vadd.f32 %v370, %v800
        %v947 = vadd.f32 %v371, %v803
        %v948 = vadd.f32 %v372, %v805
        %v949 = vadd.f32 %v373, %v808
        %v950 = vadd.f32 %v374, %v810
        %v951 = vadd.f32 %v375, %v813
        %v952 = vadd.f32 %v376, %v815
        %v953 = vadd.f32 %v377, %v818
        %v954 = vadd.f32 %v378, %v820
        %v955 = vadd.f32 %v379, %v823
        %v956 = vadd.f32 %v380, %v825
        %v957 = vadd.f32 %v381, %v828
        %v958 = vadd.f32 %v382, %v830
        %v959 = vadd.f32 %v383, %v833
        %v960 = vadd.f32 %v384, %v835
        %v961 = vadd.f32 %v385, %v838
        %v962 = vadd.f32 %v386, %v840
        %v963 = vadd.f32 %v387, %v843
        %v964 = vadd.f32 %v388, %v845
        %v965 = vadd.f32 %v389, %v848
        %v966 = vadd.f32 %v390, %v850
        %v967 = vadd.f32 %v391, %v853
        %v968 = vadd.f32 %v392, %v855
        %v969 = vadd.f32 %v393, %v858
        %v970 = vadd.f32 %v394, %v860
        %v971 = vadd.f32 %v395, %v863
        %v972 = vadd.f32 %v396, %v865
        %v973 = vadd.f32 %v397, %v868
        %v974 = vadd.f32 %v398, %v870
        %v975 = vadd.f32 %v399, %v873
        %v976 = vadd.f32 %v400, %v875
        %v977 = vadd.f32 %v401, %v878
        %v978 = vadd.f32 %v402, %v880
        %v979 = vadd.f32 %v403, %v883
        %v980 = vadd.f32 %v404, %v885
        %v981 = vadd.f32 %v405, %v888
        %v982 = vadd.f32 %v406, %v890
        %v983 = vadd.f32 %v407, %v893
        %v984 = vadd.f32 %v408, %v895
        %v985 = vadd.f32 %v409, %v898
        %v986 = vadd.f32 %v410, %v900
        %v987 = vadd.f32 %v411, %v903
        %v988 = vadd.f32 %v412, %v905
        %v989 = vadd.f32 %v413, %v908
        %v990 = vadd.f32 %v414, %v910
        %v991 = vadd.f32 %v415, %v913
        %v992 = vadd.f32 %v416, %v915
        %v993 = vadd.f32 %v417, %v918
        %v994 = vadd.f32 %v418, %v920
        %v995 = vadd.f32 %v419, %v923
        %v996 = vadd.f32 %v420, %v925
        %v997 = vadd.f32 %v421, %v928
        %v998 = vadd.f32 %v422, %v930
        %v999 = vadd.f32 %v423, %v933
        %v1000 = vadd.f32 %v424, %v935
        %1001 = vst [vmem:[#allocation2] sm:$0xff] %v937
        %1002 = vst [vmem:[#allocation2 + $0x8] sm:$0xff] %v938
        %1003 = vst [vmem:[#allocation2 + $0x10] sm:$0xff] %v939
        %1004 = vst [vmem:[#allocation2 + $0x18] sm:$0xff] %v940
        %1005 = vst [vmem:[#allocation2 + $0x20] sm:$0xff] %v941
        %1006 = vst [vmem:[#allocation2 + $0x28] sm:$0xff] %v942
        %1007 = vst [vmem:[#allocation2 + $0x30] sm:$0xff] %v943
        %1008 = vst [vmem:[#allocation2 + $0x38] sm:$0xff] %v944
        %1009 = vst [vmem:[#allocation2 + $0x40] sm:$0xff] %v945
        %1010 = vst [vmem:[#allocation2 + $0x48] sm:$0xff] %v946
        %1011 = vst [vmem:[#allocation2 + $0x50] sm:$0xff] %v947
        %1012 = vst [vmem:[#allocation2 + $0x58] sm:$0xff] %v948
        %1013 = vst [vmem:[#allocation2 + $0x60] sm:$0xff] %v949
        %1014 = vst [vmem:[#allocation2 + $0x68] sm:$0xff] %v950
        %1015 = vst [vmem:[#allocation2 + $0x70] sm:$0xff] %v951
        %1016 = vst [vmem:[#allocation2 + $0x78] sm:$0xff] %v952
        %1017 = vst [vmem:[#allocation2 + $0x80] sm:$0xff] %v953
        %1018 = vst [vmem:[#allocation2 + $0x88] sm:$0xff] %v954
        %1019 = vst [vmem:[#allocation2 + $0x90] sm:$0xff] %v955
        %1020 = vst [vmem:[#allocation2 + $0x98] sm:$0xff] %v956
        %1021 = vst [vmem:[#allocation2 + $0xa0] sm:$0xff] %v957
        %1022 = vst [vmem:[#allocation2 + $0xa8] sm:$0xff] %v958
        %1023 = vst [vmem:[#allocation2 + $0xb0] sm:$0xff] %v959
        %1024 = vst [vmem:[#allocation2 + $0xb8] sm:$0xff] %v960
        %1025 = vst [vmem:[#allocation2 + $0xc0] sm:$0xff] %v961
        %1026 = vst [vmem:[#allocation2 + $0xc8] sm:$0xff] %v962
        %1027 = vst [vmem:[#allocation2 + $0xd0] sm:$0xff] %v963
        %1028 = vst [vmem:[#allocation2 + $0xd8] sm:$0xff] %v964
        %1029 = vst [vmem:[#allocation2 + $0xe0] sm:$0xff] %v965
        %1030 = vst [vmem:[#allocation2 + $0xe8] sm:$0xff] %v966
        %1031 = vst [vmem:[#allocation2 + $0xf0] sm:$0xff] %v967
        %1032 = vst [vmem:[#allocation2 + $0xf8] sm:$0xff] %v968
        %1033 = vst [vmem:[#allocation2 + $0x100] sm:$0xff] %v969
        %1034 = vst [vmem:[#allocation2 + $0x108] sm:$0xff] %v970
        %1035 = vst [vmem:[#allocation2 + $0x110] sm:$0xff] %v971
        %1036 = vst [vmem:[#allocation2 + $0x118] sm:$0xff] %v972
        %1037 = vst [vmem:[#allocation2 + $0x120] sm:$0xff] %v973
        %1038 = vst [vmem:[#allocation2 + $0x128] sm:$0xff] %v974
        %1039 = vst [vmem:[#allocation2 + $0x130] sm:$0xff] %v975
        %1040 = vst [vmem:[#allocation2 + $0x138] sm:$0xff] %v976
        %1041 = vst [vmem:[#allocation2 + $0x140] sm:$0xff] %v977
        %1042 = vst [vmem:[#allocation2 + $0x148] sm:$0xff] %v978
        %1043 = vst [vmem:[#allocation2 + $0x150] sm:$0xff] %v979
        %1044 = vst [vmem:[#allocation2 + $0x158] sm:$0xff] %v980
        %1045 = vst [vmem:[#allocation2 + $0x160] sm:$0xff] %v981
        %1046 = vst [vmem:[#allocation2 + $0x168] sm:$0xff] %v982
        %1047 = vst [vmem:[#allocation2 + $0x170] sm:$0xff] %v983
        %1048 = vst [vmem:[#allocation2 + $0x178] sm:$0xff] %v984
        %1049 = vst [vmem:[#allocation2 + $0x180] sm:$0xff] %v985
        %1050 = vst [vmem:[#allocation2 + $0x188] sm:$0xff] %v986
        %1051 = vst [vmem:[#allocation2 + $0x190] sm:$0xff] %v987
        %1052 = vst [vmem:[#allocation2 + $0x198] sm:$0xff] %v988
        %1053 = vst [vmem:[#allocation2 + $0x1a0] sm:$0xff] %v989
        %1054 = vst [vmem:[#allocation2 + $0x1a8] sm:$0xff] %v990
        %1055 = vst [vmem:[#allocation2 + $0x1b0] sm:$0xff] %v991
        %1056 = vst [vmem:[#allocation2 + $0x1b8] sm:$0xff] %v992
        %1057 = vst [vmem:[#allocation2 + $0x1c0] sm:$0xff] %v993
        %1058 = vst [vmem:[#allocation2 + $0x1c8] sm:$0xff] %v994
        %1059 = vst [vmem:[#allocation2 + $0x1d0] sm:$0xff] %v995
        %1060 = vst [vmem:[#allocation2 + $0x1d8] sm:$0xff] %v996
        %1061 = vst [vmem:[#allocation2 + $0x1e0] sm:$0xff] %v997
        %1062 = vst [vmem:[#allocation2 + $0x1e8] sm:$0xff] %v998
        %1063 = vst [vmem:[#allocation2 + $0x1f0] sm:$0xff] %v999
        %1064 = vst [vmem:[#allocation2 + $0x1f8] sm:$0xff] %v1000
        // Predicated region
        $region41: #{tpu_custom_call.1} parent=35 // pred_check
          %p1065 = pneg %p293
        $region42: #{tpu_custom_call.1} parent=35 // pred_check_branch
          %1067 = sbr.rel (%p1065) target = $region44
        $region43: #{tpu_custom_call.1} parent=35 // pred_region
          %v1068 = vld [vmem:[#allocation2] sm:$0xff]
          %v1069 = vld [vmem:[#allocation2 + $0x8] sm:$0xff]
          %v1070 = vld [vmem:[#allocation2 + $0x10] sm:$0xff]
          %v1071 = vld [vmem:[#allocation2 + $0x18] sm:$0xff]
          %v1072 = vld [vmem:[#allocation2 + $0x20] sm:$0xff]
          %v1073 = vld [vmem:[#allocation2 + $0x28] sm:$0xff]
          %v1074 = vld [vmem:[#allocation2 + $0x30] sm:$0xff]
          %v1075 = vld [vmem:[#allocation2 + $0x38] sm:$0xff]
          %v1076 = vld [vmem:[#allocation2 + $0x40] sm:$0xff]
          %v1077 = vld [vmem:[#allocation2 + $0x48] sm:$0xff]
          %v1078 = vld [vmem:[#allocation2 + $0x50] sm:$0xff]
          %v1079 = vld [vmem:[#allocation2 + $0x58] sm:$0xff]
          %v1080 = vld [vmem:[#allocation2 + $0x60] sm:$0xff]
          %v1081 = vld [vmem:[#allocation2 + $0x68] sm:$0xff]
          %v1082 = vld [vmem:[#allocation2 + $0x70] sm:$0xff]
          %v1083 = vld [vmem:[#allocation2 + $0x78] sm:$0xff]
          %v1084 = vld [vmem:[#allocation2 + $0x80] sm:$0xff]
          %v1085 = vld [vmem:[#allocation2 + $0x88] sm:$0xff]
          %v1086 = vld [vmem:[#allocation2 + $0x90] sm:$0xff]
          %v1087 = vld [vmem:[#allocation2 + $0x98] sm:$0xff]
          %v1088 = vld [vmem:[#allocation2 + $0xa0] sm:$0xff]
          %v1089 = vld [vmem:[#allocation2 + $0xa8] sm:$0xff]
          %v1090 = vld [vmem:[#allocation2 + $0xb0] sm:$0xff]
          %v1091 = vld [vmem:[#allocation2 + $0xb8] sm:$0xff]
          %v1092 = vld [vmem:[#allocation2 + $0xc0] sm:$0xff]
          %v1093 = vld [vmem:[#allocation2 + $0xc8] sm:$0xff]
          %v1094 = vld [vmem:[#allocation2 + $0xd0] sm:$0xff]
          %v1095 = vld [vmem:[#allocation2 + $0xd8] sm:$0xff]
          %v1096 = vld [vmem:[#allocation2 + $0xe0] sm:$0xff]
          %v1097 = vld [vmem:[#allocation2 + $0xe8] sm:$0xff]
          %v1098 = vld [vmem:[#allocation2 + $0xf0] sm:$0xff]
          %v1099 = vld [vmem:[#allocation2 + $0xf8] sm:$0xff]
          %v1100 = vld [vmem:[#allocation2 + $0x100] sm:$0xff]
          %v1101 = vld [vmem:[#allocation2 + $0x108] sm:$0xff]
          %v1102 = vld [vmem:[#allocation2 + $0x110] sm:$0xff]
          %v1103 = vld [vmem:[#allocation2 + $0x118] sm:$0xff]
          %v1104 = vld [vmem:[#allocation2 + $0x120] sm:$0xff]
          %v1105 = vld [vmem:[#allocation2 + $0x128] sm:$0xff]
          %v1106 = vld [vmem:[#allocation2 + $0x130] sm:$0xff]
          %v1107 = vld [vmem:[#allocation2 + $0x138] sm:$0xff]
          %v1108 = vld [vmem:[#allocation2 + $0x140] sm:$0xff]
          %v1109 = vld [vmem:[#allocation2 + $0x148] sm:$0xff]
          %v1110 = vld [vmem:[#allocation2 + $0x150] sm:$0xff]
          %v1111 = vld [vmem:[#allocation2 + $0x158] sm:$0xff]
          %v1112 = vld [vmem:[#allocation2 + $0x160] sm:$0xff]
          %v1113 = vld [vmem:[#allocation2 + $0x168] sm:$0xff]
          %v1114 = vld [vmem:[#allocation2 + $0x170] sm:$0xff]
          %v1115 = vld [vmem:[#allocation2 + $0x178] sm:$0xff]
          %v1116 = vld [vmem:[#allocation2 + $0x180] sm:$0xff]
          %v1117 = vld [vmem:[#allocation2 + $0x188] sm:$0xff]
          %v1118 = vld [vmem:[#allocation2 + $0x190] sm:$0xff]
          %v1119 = vld [vmem:[#allocation2 + $0x198] sm:$0xff]
          %v1120 = vld [vmem:[#allocation2 + $0x1a0] sm:$0xff]
          %v1121 = vld [vmem:[#allocation2 + $0x1a8] sm:$0xff]
          %v1122 = vld [vmem:[#allocation2 + $0x1b0] sm:$0xff]
          %v1123 = vld [vmem:[#allocation2 + $0x1b8] sm:$0xff]
          %v1124 = vld [vmem:[#allocation2 + $0x1c0] sm:$0xff]
          %v1125 = vld [vmem:[#allocation2 + $0x1c8] sm:$0xff]
          %v1126 = vld [vmem:[#allocation2 + $0x1d0] sm:$0xff]
          %v1127 = vld [vmem:[#allocation2 + $0x1d8] sm:$0xff]
          %v1128 = vld [vmem:[#allocation2 + $0x1e0] sm:$0xff]
          %v1129 = vld [vmem:[#allocation2 + $0x1e8] sm:$0xff]
          %v1130 = vld [vmem:[#allocation2 + $0x1f0] sm:$0xff]
          %v1131 = vld [vmem:[#allocation2 + $0x1f8] sm:$0xff]
          %v1132 = vld [vmem:[%s287] sm:$0x1]
          %v1134 = vperm.slane %v1132, 0
          %v1136 = vmul.f32 %v1068, %v1134
          %v1137 = vmul.f32 %v1069, %v1134
          %v1138 = vmul.f32 %v1070, %v1134
          %v1139 = vmul.f32 %v1071, %v1134
          %v1140 = vmul.f32 %v1072, %v1134
          %v1141 = vmul.f32 %v1073, %v1134
          %v1142 = vmul.f32 %v1074, %v1134
          %v1143 = vmul.f32 %v1075, %v1134
          %v1144 = vmul.f32 %v1076, %v1134
          %v1145 = vmul.f32 %v1077, %v1134
          %v1146 = vmul.f32 %v1078, %v1134
          %v1147 = vmul.f32 %v1079, %v1134
          %v1148 = vmul.f32 %v1080, %v1134
          %v1149 = vmul.f32 %v1081, %v1134
          %v1150 = vmul.f32 %v1082, %v1134
          %v1151 = vmul.f32 %v1083, %v1134
          %v1152 = vmul.f32 %v1084, %v1134
          %v1153 = vmul.f32 %v1085, %v1134
          %v1154 = vmul.f32 %v1086, %v1134
          %v1155 = vmul.f32 %v1087, %v1134
          %v1156 = vmul.f32 %v1088, %v1134
          %v1157 = vmul.f32 %v1089, %v1134
          %v1158 = vmul.f32 %v1090, %v1134
          %v1159 = vmul.f32 %v1091, %v1134
          %v1160 = vmul.f32 %v1092, %v1134
          %v1161 = vmul.f32 %v1093, %v1134
          %v1162 = vmul.f32 %v1094, %v1134
          %v1163 = vmul.f32 %v1095, %v1134
          %v1164 = vmul.f32 %v1096, %v1134
          %v1165 = vmul.f32 %v1097, %v1134
          %v1166 = vmul.f32 %v1098, %v1134
          %v1167 = vmul.f32 %v1099, %v1134
          %v1168 = vmul.f32 %v1100, %v1134
          %v1169 = vmul.f32 %v1101, %v1134
          %v1170 = vmul.f32 %v1102, %v1134
          %v1171 = vmul.f32 %v1103, %v1134
          %v1172 = vmul.f32 %v1104, %v1134
          %v1173 = vmul.f32 %v1105, %v1134
          %v1174 = vmul.f32 %v1106, %v1134
          %v1175 = vmul.f32 %v1107, %v1134
          %v1176 = vmul.f32 %v1108, %v1134
          %v1177 = vmul.f32 %v1109, %v1134
          %v1178 = vmul.f32 %v1110, %v1134
          %v1179 = vmul.f32 %v1111, %v1134
          %v1180 = vmul.f32 %v1112, %v1134
          %v1181 = vmul.f32 %v1113, %v1134
          %v1182 = vmul.f32 %v1114, %v1134
          %v1183 = vmul.f32 %v1115, %v1134
          %v1184 = vmul.f32 %v1116, %v1134
          %v1185 = vmul.f32 %v1117, %v1134
          %v1186 = vmul.f32 %v1118, %v1134
          %v1187 = vmul.f32 %v1119, %v1134
          %v1188 = vmul.f32 %v1120, %v1134
          %v1189 = vmul.f32 %v1121, %v1134
          %v1190 = vmul.f32 %v1122, %v1134
          %v1191 = vmul.f32 %v1123, %v1134
          %v1192 = vmul.f32 %v1124, %v1134
          %v1193 = vmul.f32 %v1125, %v1134
          %v1194 = vmul.f32 %v1126, %v1134
          %v1195 = vmul.f32 %v1127, %v1134
          %v1196 = vmul.f32 %v1128, %v1134
          %v1197 = vmul.f32 %v1129, %v1134
          %v1198 = vmul.f32 %v1130, %v1134
          %v1199 = vmul.f32 %v1131, %v1134
          %v1200 = vld [vmem:[%s290] sm:$0x1]
          %v1202 = vperm.slane %v1200, 0
          %v1204 = vadd.f32 %v1136, %v1202
          %v1205 = vadd.f32 %v1137, %v1202
          %v1206 = vadd.f32 %v1138, %v1202
          %v1207 = vadd.f32 %v1139, %v1202
          %v1208 = vadd.f32 %v1140, %v1202
          %v1209 = vadd.f32 %v1141, %v1202
          %v1210 = vadd.f32 %v1142, %v1202
          %v1211 = vadd.f32 %v1143, %v1202
          %v1212 = vadd.f32 %v1144, %v1202
          %v1213 = vadd.f32 %v1145, %v1202
          %v1214 = vadd.f32 %v1146, %v1202
          %v1215 = vadd.f32 %v1147, %v1202
          %v1216 = vadd.f32 %v1148, %v1202
          %v1217 = vadd.f32 %v1149, %v1202
          %v1218 = vadd.f32 %v1150, %v1202
          %v1219 = vadd.f32 %v1151, %v1202
          %v1220 = vadd.f32 %v1152, %v1202
          %v1221 = vadd.f32 %v1153, %v1202
          %v1222 = vadd.f32 %v1154, %v1202
          %v1223 = vadd.f32 %v1155, %v1202
          %v1224 = vadd.f32 %v1156, %v1202
          %v1225 = vadd.f32 %v1157, %v1202
          %v1226 = vadd.f32 %v1158, %v1202
          %v1227 = vadd.f32 %v1159, %v1202
          %v1228 = vadd.f32 %v1160, %v1202
          %v1229 = vadd.f32 %v1161, %v1202
          %v1230 = vadd.f32 %v1162, %v1202
          %v1231 = vadd.f32 %v1163, %v1202
          %v1232 = vadd.f32 %v1164, %v1202
          %v1233 = vadd.f32 %v1165, %v1202
          %v1234 = vadd.f32 %v1166, %v1202
          %v1235 = vadd.f32 %v1167, %v1202
          %v1236 = vadd.f32 %v1168, %v1202
          %v1237 = vadd.f32 %v1169, %v1202
          %v1238 = vadd.f32 %v1170, %v1202
          %v1239 = vadd.f32 %v1171, %v1202
          %v1240 = vadd.f32 %v1172, %v1202
          %v1241 = vadd.f32 %v1173, %v1202
          %v1242 = vadd.f32 %v1174, %v1202
          %v1243 = vadd.f32 %v1175, %v1202
          %v1244 = vadd.f32 %v1176, %v1202
          %v1245 = vadd.f32 %v1177, %v1202
          %v1246 = vadd.f32 %v1178, %v1202
          %v1247 = vadd.f32 %v1179, %v1202
          %v1248 = vadd.f32 %v1180, %v1202
          %v1249 = vadd.f32 %v1181, %v1202
          %v1250 = vadd.f32 %v1182, %v1202
          %v1251 = vadd.f32 %v1183, %v1202
          %v1252 = vadd.f32 %v1184, %v1202
          %v1253 = vadd.f32 %v1185, %v1202
          %v1254 = vadd.f32 %v1186, %v1202
          %v1255 = vadd.f32 %v1187, %v1202
          %v1256 = vadd.f32 %v1188, %v1202
          %v1257 = vadd.f32 %v1189, %v1202
          %v1258 = vadd.f32 %v1190, %v1202
          %v1259 = vadd.f32 %v1191, %v1202
          %v1260 = vadd.f32 %v1192, %v1202
          %v1261 = vadd.f32 %v1193, %v1202
          %v1262 = vadd.f32 %v1194, %v1202
          %v1263 = vadd.f32 %v1195, %v1202
          %v1264 = vadd.f32 %v1196, %v1202
          %v1265 = vadd.f32 %v1197, %v1202
          %v1266 = vadd.f32 %v1198, %v1202
          %v1267 = vadd.f32 %v1199, %v1202
          %vm1268 = vcmp.ge.f32.partialorder %v1204, 0.0
          %vm1269 = vcmp.ge.f32.partialorder %v1205, 0.0
          %vm1270 = vcmp.ge.f32.partialorder %v1206, 0.0
          %vm1271 = vcmp.ge.f32.partialorder %v1207, 0.0
          %vm1272 = vcmp.ge.f32.partialorder %v1208, 0.0
          %vm1273 = vcmp.ge.f32.partialorder %v1209, 0.0
          %vm1274 = vcmp.ge.f32.partialorder %v1210, 0.0
          %vm1275 = vcmp.ge.f32.partialorder %v1211, 0.0
          %vm1276 = vcmp.ge.f32.partialorder %v1212, 0.0
          %vm1277 = vcmp.ge.f32.partialorder %v1213, 0.0
          %vm1278 = vcmp.ge.f32.partialorder %v1214, 0.0
          %vm1279 = vcmp.ge.f32.partialorder %v1215, 0.0
          %vm1280 = vcmp.ge.f32.partialorder %v1216, 0.0
          %vm1281 = vcmp.ge.f32.partialorder %v1217, 0.0
          %vm1282 = vcmp.ge.f32.partialorder %v1218, 0.0
          %vm1283 = vcmp.ge.f32.partialorder %v1219, 0.0
          %vm1284 = vcmp.ge.f32.partialorder %v1220, 0.0
          %vm1285 = vcmp.ge.f32.partialorder %v1221, 0.0
          %vm1286 = vcmp.ge.f32.partialorder %v1222, 0.0
          %vm1287 = vcmp.ge.f32.partialorder %v1223, 0.0
          %vm1288 = vcmp.ge.f32.partialorder %v1224, 0.0
          %vm1289 = vcmp.ge.f32.partialorder %v1225, 0.0
          %vm1290 = vcmp.ge.f32.partialorder %v1226, 0.0
          %vm1291 = vcmp.ge.f32.partialorder %v1227, 0.0
          %vm1292 = vcmp.ge.f32.partialorder %v1228, 0.0
          %vm1293 = vcmp.ge.f32.partialorder %v1229, 0.0
          %vm1294 = vcmp.ge.f32.partialorder %v1230, 0.0
          %vm1295 = vcmp.ge.f32.partialorder %v1231, 0.0
          %vm1296 = vcmp.ge.f32.partialorder %v1232, 0.0
          %vm1297 = vcmp.ge.f32.partialorder %v1233, 0.0
          %vm1298 = vcmp.ge.f32.partialorder %v1234, 0.0
          %vm1299 = vcmp.ge.f32.partialorder %v1235, 0.0
          %vm1300 = vcmp.ge.f32.partialorder %v1236, 0.0
          %vm1301 = vcmp.ge.f32.partialorder %v1237, 0.0
          %vm1302 = vcmp.ge.f32.partialorder %v1238, 0.0
          %vm1303 = vcmp.ge.f32.partialorder %v1239, 0.0
          %vm1304 = vcmp.ge.f32.partialorder %v1240, 0.0
          %vm1305 = vcmp.ge.f32.partialorder %v1241, 0.0
          %vm1306 = vcmp.ge.f32.partialorder %v1242, 0.0
          %vm1307 = vcmp.ge.f32.partialorder %v1243, 0.0
          %vm1308 = vcmp.ge.f32.partialorder %v1244, 0.0
          %vm1309 = vcmp.ge.f32.partialorder %v1245, 0.0
          %vm1310 = vcmp.ge.f32.partialorder %v1246, 0.0
          %vm1311 = vcmp.ge.f32.partialorder %v1247, 0.0
          %vm1312 = vcmp.ge.f32.partialorder %v1248, 0.0
          %vm1313 = vcmp.ge.f32.partialorder %v1249, 0.0
          %vm1314 = vcmp.ge.f32.partialorder %v1250, 0.0
          %vm1315 = vcmp.ge.f32.partialorder %v1251, 0.0
          %vm1316 = vcmp.ge.f32.partialorder %v1252, 0.0
          %vm1317 = vcmp.ge.f32.partialorder %v1253, 0.0
          %vm1318 = vcmp.ge.f32.partialorder %v1254, 0.0
          %vm1319 = vcmp.ge.f32.partialorder %v1255, 0.0
          %vm1320 = vcmp.ge.f32.partialorder %v1256, 0.0
          %vm1321 = vcmp.ge.f32.partialorder %v1257, 0.0
          %vm1322 = vcmp.ge.f32.partialorder %v1258, 0.0
          %vm1323 = vcmp.ge.f32.partialorder %v1259, 0.0
          %vm1324 = vcmp.ge.f32.partialorder %v1260, 0.0
          %vm1325 = vcmp.ge.f32.partialorder %v1261, 0.0
          %vm1326 = vcmp.ge.f32.partialorder %v1262, 0.0
          %vm1327 = vcmp.ge.f32.partialorder %v1263, 0.0
          %vm1328 = vcmp.ge.f32.partialorder %v1264, 0.0
          %vm1329 = vcmp.ge.f32.partialorder %v1265, 0.0
          %vm1330 = vcmp.ge.f32.partialorder %v1266, 0.0
          %vm1331 = vcmp.ge.f32.partialorder %v1267, 0.0
          %v1332 = vmul.f32 %v1204, 0.0
          %v1333 = vmul.f32 %v1205, 0.0
          %v1334 = vmul.f32 %v1206, 0.0
          %v1335 = vmul.f32 %v1207, 0.0
          %v1336 = vmul.f32 %v1208, 0.0
          %v1337 = vmul.f32 %v1209, 0.0
          %v1338 = vmul.f32 %v1210, 0.0
          %v1339 = vmul.f32 %v1211, 0.0
          %v1340 = vmul.f32 %v1212, 0.0
          %v1341 = vmul.f32 %v1213, 0.0
          %v1342 = vmul.f32 %v1214, 0.0
          %v1343 = vmul.f32 %v1215, 0.0
          %v1344 = vmul.f32 %v1216, 0.0
          %v1345 = vmul.f32 %v1217, 0.0
          %v1346 = vmul.f32 %v1218, 0.0
          %v1347 = vmul.f32 %v1219, 0.0
          %v1348 = vmul.f32 %v1220, 0.0
          %v1349 = vmul.f32 %v1221, 0.0
          %v1350 = vmul.f32 %v1222, 0.0
          %v1351 = vmul.f32 %v1223, 0.0
          %v1352 = vmul.f32 %v1224, 0.0
          %v1353 = vmul.f32 %v1225, 0.0
          %v1354 = vmul.f32 %v1226, 0.0
          %v1355 = vmul.f32 %v1227, 0.0
          %v1356 = vmul.f32 %v1228, 0.0
          %v1357 = vmul.f32 %v1229, 0.0
          %v1358 = vmul.f32 %v1230, 0.0
          %v1359 = vmul.f32 %v1231, 0.0
          %v1360 = vmul.f32 %v1232, 0.0
          %v1361 = vmul.f32 %v1233, 0.0
          %v1362 = vmul.f32 %v1234, 0.0
          %v1363 = vmul.f32 %v1235, 0.0
          %v1364 = vmul.f32 %v1236, 0.0
          %v1365 = vmul.f32 %v1237, 0.0
          %v1366 = vmul.f32 %v1238, 0.0
          %v1367 = vmul.f32 %v1239, 0.0
          %v1368 = vmul.f32 %v1240, 0.0
          %v1369 = vmul.f32 %v1241, 0.0
          %v1370 = vmul.f32 %v1242, 0.0
          %v1371 = vmul.f32 %v1243, 0.0
          %v1372 = vmul.f32 %v1244, 0.0
          %v1373 = vmul.f32 %v1245, 0.0
          %v1374 = vmul.f32 %v1246, 0.0
          %v1375 = vmul.f32 %v1247, 0.0
          %v1376 = vmul.f32 %v1248, 0.0
          %v1377 = vmul.f32 %v1249, 0.0
          %v1378 = vmul.f32 %v1250, 0.0
          %v1379 = vmul.f32 %v1251, 0.0
          %v1380 = vmul.f32 %v1252, 0.0
          %v1381 = vmul.f32 %v1253, 0.0
          %v1382 = vmul.f32 %v1254, 0.0
          %v1383 = vmul.f32 %v1255, 0.0
          %v1384 = vmul.f32 %v1256, 0.0
          %v1385 = vmul.f32 %v1257, 0.0
          %v1386 = vmul.f32 %v1258, 0.0
          %v1387 = vmul.f32 %v1259, 0.0
          %v1388 = vmul.f32 %v1260, 0.0
          %v1389 = vmul.f32 %v1261, 0.0
          %v1390 = vmul.f32 %v1262, 0.0
          %v1391 = vmul.f32 %v1263, 0.0
          %v1392 = vmul.f32 %v1264, 0.0
          %v1393 = vmul.f32 %v1265, 0.0
          %v1394 = vmul.f32 %v1266, 0.0
          %v1395 = vmul.f32 %v1267, 0.0
          %v1396 = vsel %vm1268, %v1204, %v1332
          %v1397 = vsel %vm1269, %v1205, %v1333
          %v1398 = vsel %vm1270, %v1206, %v1334
          %v1399 = vsel %vm1271, %v1207, %v1335
          %v1400 = vsel %vm1272, %v1208, %v1336
          %v1401 = vsel %vm1273, %v1209, %v1337
          %v1402 = vsel %vm1274, %v1210, %v1338
          %v1403 = vsel %vm1275, %v1211, %v1339
          %v1404 = vsel %vm1276, %v1212, %v1340
          %v1405 = vsel %vm1277, %v1213, %v1341
          %v1406 = vsel %vm1278, %v1214, %v1342
          %v1407 = vsel %vm1279, %v1215, %v1343
          %v1408 = vsel %vm1280, %v1216, %v1344
          %v1409 = vsel %vm1281, %v1217, %v1345
          %v1410 = vsel %vm1282, %v1218, %v1346
          %v1411 = vsel %vm1283, %v1219, %v1347
          %v1412 = vsel %vm1284, %v1220, %v1348
          %v1413 = vsel %vm1285, %v1221, %v1349
          %v1414 = vsel %vm1286, %v1222, %v1350
          %v1415 = vsel %vm1287, %v1223, %v1351
          %v1416 = vsel %vm1288, %v1224, %v1352
          %v1417 = vsel %vm1289, %v1225, %v1353
          %v1418 = vsel %vm1290, %v1226, %v1354
          %v1419 = vsel %vm1291, %v1227, %v1355
          %v1420 = vsel %vm1292, %v1228, %v1356
          %v1421 = vsel %vm1293, %v1229, %v1357
          %v1422 = vsel %vm1294, %v1230, %v1358
          %v1423 = vsel %vm1295, %v1231, %v1359
          %v1424 = vsel %vm1296, %v1232, %v1360
          %v1425 = vsel %vm1297, %v1233, %v1361
          %v1426 = vsel %vm1298, %v1234, %v1362
          %v1427 = vsel %vm1299, %v1235, %v1363
          %v1428 = vsel %vm1300, %v1236, %v1364
          %v1429 = vsel %vm1301, %v1237, %v1365
          %v1430 = vsel %vm1302, %v1238, %v1366
          %v1431 = vsel %vm1303, %v1239, %v1367
          %v1432 = vsel %vm1304, %v1240, %v1368
          %v1433 = vsel %vm1305, %v1241, %v1369
          %v1434 = vsel %vm1306, %v1242, %v1370
          %v1435 = vsel %vm1307, %v1243, %v1371
          %v1436 = vsel %vm1308, %v1244, %v1372
          %v1437 = vsel %vm1309, %v1245, %v1373
          %v1438 = vsel %vm1310, %v1246, %v1374
          %v1439 = vsel %vm1311, %v1247, %v1375
          %v1440 = vsel %vm1312, %v1248, %v1376
          %v1441 = vsel %vm1313, %v1249, %v1377
          %v1442 = vsel %vm1314, %v1250, %v1378
          %v1443 = vsel %vm1315, %v1251, %v1379
          %v1444 = vsel %vm1316, %v1252, %v1380
          %v1445 = vsel %vm1317, %v1253, %v1381
          %v1446 = vsel %vm1318, %v1254, %v1382
          %v1447 = vsel %vm1319, %v1255, %v1383
          %v1448 = vsel %vm1320, %v1256, %v1384
          %v1449 = vsel %vm1321, %v1257, %v1385
          %v1450 = vsel %vm1322, %v1258, %v1386
          %v1451 = vsel %vm1323, %v1259, %v1387
          %v1452 = vsel %vm1324, %v1260, %v1388
          %v1453 = vsel %vm1325, %v1261, %v1389
          %v1454 = vsel %vm1326, %v1262, %v1390
          %v1455 = vsel %vm1327, %v1263, %v1391
          %v1456 = vsel %vm1328, %v1264, %v1392
          %v1457 = vsel %vm1329, %v1265, %v1393
          %v1458 = vsel %vm1330, %v1266, %v1394
          %v1459 = vsel %vm1331, %v1267, %v1395
          %v1460 = vpack.c.bf16 %v1396, %v1396
          %v1461 = vpack.c.bf16 %v1397, %v1397
          %v1462 = vpack.c.bf16 %v1398, %v1398
          %v1463 = vpack.c.bf16 %v1399, %v1399
          %v1464 = vpack.c.bf16 %v1400, %v1400
          %v1465 = vpack.c.bf16 %v1401, %v1401
          %v1466 = vpack.c.bf16 %v1402, %v1402
          %v1467 = vpack.c.bf16 %v1403, %v1403
          %v1468 = vpack.c.bf16 %v1404, %v1404
          %v1469 = vpack.c.bf16 %v1405, %v1405
          %v1470 = vpack.c.bf16 %v1406, %v1406
          %v1471 = vpack.c.bf16 %v1407, %v1407
          %v1472 = vpack.c.bf16 %v1408, %v1408
          %v1473 = vpack.c.bf16 %v1409, %v1409
          %v1474 = vpack.c.bf16 %v1410, %v1410
          %v1475 = vpack.c.bf16 %v1411, %v1411
          %v1476 = vpack.c.bf16 %v1412, %v1412
          %v1477 = vpack.c.bf16 %v1413, %v1413
          %v1478 = vpack.c.bf16 %v1414, %v1414
          %v1479 = vpack.c.bf16 %v1415, %v1415
          %v1480 = vpack.c.bf16 %v1416, %v1416
          %v1481 = vpack.c.bf16 %v1417, %v1417
          %v1482 = vpack.c.bf16 %v1418, %v1418
          %v1483 = vpack.c.bf16 %v1419, %v1419
          %v1484 = vpack.c.bf16 %v1420, %v1420
          %v1485 = vpack.c.bf16 %v1421, %v1421
          %v1486 = vpack.c.bf16 %v1422, %v1422
          %v1487 = vpack.c.bf16 %v1423, %v1423
          %v1488 = vpack.c.bf16 %v1424, %v1424
          %v1489 = vpack.c.bf16 %v1425, %v1425
          %v1490 = vpack.c.bf16 %v1426, %v1426
          %v1491 = vpack.c.bf16 %v1427, %v1427
          %v1492 = vpack.c.bf16 %v1428, %v1428
          %v1493 = vpack.c.bf16 %v1429, %v1429
          %v1494 = vpack.c.bf16 %v1430, %v1430
          %v1495 = vpack.c.bf16 %v1431, %v1431
          %v1496 = vpack.c.bf16 %v1432, %v1432
          %v1497 = vpack.c.bf16 %v1433, %v1433
          %v1498 = vpack.c.bf16 %v1434, %v1434
          %v1499 = vpack.c.bf16 %v1435, %v1435
          %v1500 = vpack.c.bf16 %v1436, %v1436
          %v1501 = vpack.c.bf16 %v1437, %v1437
          %v1502 = vpack.c.bf16 %v1438, %v1438
          %v1503 = vpack.c.bf16 %v1439, %v1439
          %v1504 = vpack.c.bf16 %v1440, %v1440
          %v1505 = vpack.c.bf16 %v1441, %v1441
          %v1506 = vpack.c.bf16 %v1442, %v1442
          %v1507 = vpack.c.bf16 %v1443, %v1443
          %v1508 = vpack.c.bf16 %v1444, %v1444
          %v1509 = vpack.c.bf16 %v1445, %v1445
          %v1510 = vpack.c.bf16 %v1446, %v1446
          %v1511 = vpack.c.bf16 %v1447, %v1447
          %v1512 = vpack.c.bf16 %v1448, %v1448
          %v1513 = vpack.c.bf16 %v1449, %v1449
          %v1514 = vpack.c.bf16 %v1450, %v1450
          %v1515 = vpack.c.bf16 %v1451, %v1451
          %v1516 = vpack.c.bf16 %v1452, %v1452
          %v1517 = vpack.c.bf16 %v1453, %v1453
          %v1518 = vpack.c.bf16 %v1454, %v1454
          %v1519 = vpack.c.bf16 %v1455, %v1455
          %v1520 = vpack.c.bf16 %v1456, %v1456
          %v1521 = vpack.c.bf16 %v1457, %v1457
          %v1522 = vpack.c.bf16 %v1458, %v1458
          %v1523 = vpack.c.bf16 %v1459, %v1459
          %1524 = vst [vmem:[%s266] sm:$0xf] %v1460
          %1525 = vst [vmem:[%s266 + $0x4] sm:$0xf] %v1461
          %1526 = vst [vmem:[%s266 + $0x8] sm:$0xf] %v1462
          %1527 = vst [vmem:[%s266 + $0xc] sm:$0xf] %v1463
          %1528 = vst [vmem:[%s266 + $0x10] sm:$0xf] %v1464
          %1529 = vst [vmem:[%s266 + $0x14] sm:$0xf] %v1465
          %1530 = vst [vmem:[%s266 + $0x18] sm:$0xf] %v1466
          %1531 = vst [vmem:[%s266 + $0x1c] sm:$0xf] %v1467
          %1532 = vst [vmem:[%s266 + $0x20] sm:$0xf] %v1468
          %1533 = vst [vmem:[%s266 + $0x24] sm:$0xf] %v1469
          %1534 = vst [vmem:[%s266 + $0x28] sm:$0xf] %v1470
          %1535 = vst [vmem:[%s266 + $0x2c] sm:$0xf] %v1471
          %1536 = vst [vmem:[%s266 + $0x30] sm:$0xf] %v1472
          %1537 = vst [vmem:[%s266 + $0x34] sm:$0xf] %v1473
          %1538 = vst [vmem:[%s266 + $0x38] sm:$0xf] %v1474
          %1539 = vst [vmem:[%s266 + $0x3c] sm:$0xf] %v1475
          %1540 = vst [vmem:[%s266 + $0x40] sm:$0xf] %v1476
          %1541 = vst [vmem:[%s266 + $0x44] sm:$0xf] %v1477
          %1542 = vst [vmem:[%s266 + $0x48] sm:$0xf] %v1478
          %1543 = vst [vmem:[%s266 + $0x4c] sm:$0xf] %v1479
          %1544 = vst [vmem:[%s266 + $0x50] sm:$0xf] %v1480
          %1545 = vst [vmem:[%s266 + $0x54] sm:$0xf] %v1481
          %1546 = vst [vmem:[%s266 + $0x58] sm:$0xf] %v1482
          %1547 = vst [vmem:[%s266 + $0x5c] sm:$0xf] %v1483
          %1548 = vst [vmem:[%s266 + $0x60] sm:$0xf] %v1484
          %1549 = vst [vmem:[%s266 + $0x64] sm:$0xf] %v1485
          %1550 = vst [vmem:[%s266 + $0x68] sm:$0xf] %v1486
          %1551 = vst [vmem:[%s266 + $0x6c] sm:$0xf] %v1487
          %1552 = vst [vmem:[%s266 + $0x70] sm:$0xf] %v1488
          %1553 = vst [vmem:[%s266 + $0x74] sm:$0xf] %v1489
          %1554 = vst [vmem:[%s266 + $0x78] sm:$0xf] %v1490
          %1555 = vst [vmem:[%s266 + $0x7c] sm:$0xf] %v1491
          %1556 = vst [vmem:[%s266 + $0x80] sm:$0xf] %v1492
          %1557 = vst [vmem:[%s266 + $0x84] sm:$0xf] %v1493
          %1558 = vst [vmem:[%s266 + $0x88] sm:$0xf] %v1494
          %1559 = vst [vmem:[%s266 + $0x8c] sm:$0xf] %v1495
          %1560 = vst [vmem:[%s266 + $0x90] sm:$0xf] %v1496
          %1561 = vst [vmem:[%s266 + $0x94] sm:$0xf] %v1497
          %1562 = vst [vmem:[%s266 + $0x98] sm:$0xf] %v1498
          %1563 = vst [vmem:[%s266 + $0x9c] sm:$0xf] %v1499
          %1564 = vst [vmem:[%s266 + $0xa0] sm:$0xf] %v1500
          %1565 = vst [vmem:[%s266 + $0xa4] sm:$0xf] %v1501
          %1566 = vst [vmem:[%s266 + $0xa8] sm:$0xf] %v1502
          %1567 = vst [vmem:[%s266 + $0xac] sm:$0xf] %v1503
          %1568 = vst [vmem:[%s266 + $0xb0] sm:$0xf] %v1504
          %1569 = vst [vmem:[%s266 + $0xb4] sm:$0xf] %v1505
          %1570 = vst [vmem:[%s266 + $0xb8] sm:$0xf] %v1506
          %1571 = vst [vmem:[%s266 + $0xbc] sm:$0xf] %v1507
          %1572 = vst [vmem:[%s266 + $0xc0] sm:$0xf] %v1508
          %1573 = vst [vmem:[%s266 + $0xc4] sm:$0xf] %v1509
          %1574 = vst [vmem:[%s266 + $0xc8] sm:$0xf] %v1510
          %1575 = vst [vmem:[%s266 + $0xcc] sm:$0xf] %v1511
          %1576 = vst [vmem:[%s266 + $0xd0] sm:$0xf] %v1512
          %1577 = vst [vmem:[%s266 + $0xd4] sm:$0xf] %v1513
          %1578 = vst [vmem:[%s266 + $0xd8] sm:$0xf] %v1514
          %1579 = vst [vmem:[%s266 + $0xdc] sm:$0xf] %v1515
          %1580 = vst [vmem:[%s266 + $0xe0] sm:$0xf] %v1516
          %1581 = vst [vmem:[%s266 + $0xe4] sm:$0xf] %v1517
          %1582 = vst [vmem:[%s266 + $0xe8] sm:$0xf] %v1518
          %1583 = vst [vmem:[%s266 + $0xec] sm:$0xf] %v1519
          %1584 = vst [vmem:[%s266 + $0xf0] sm:$0xf] %v1520
          %1585 = vst [vmem:[%s266 + $0xf4] sm:$0xf] %v1521
          %1586 = vst [vmem:[%s266 + $0xf8] sm:$0xf] %v1522
          %1587 = vst [vmem:[%s266 + $0xfc] sm:$0xf] %v1523
        $region44: #{tpu_custom_call.1} parent=35 // pred_fallthru
          _
        %s1588 = sand.u32 %s155, 1
        %s1589 = scalar_lea.sflag [#allocation4], %s1588
        %s1590 = sand.u32 %s155, 1
        %s1591 = smul.addr %s1590, 256
        %s1592 = scalar_lea.vmem [#allocation3], %s1591
        // Predicated region
        $region45: #{tpu_custom_call.1} parent=35 // pred_check
          %p1593 = pneg %p165
        $region46: #{tpu_custom_call.1} parent=35 // pred_check_branch
          %1595 = sbr.rel (%p1593) target = $region48
        $region47: #{tpu_custom_call.1} parent=35 // pred_region
          %s1596 = smul.u32 64, %s23
          %1598 = vsyncadd %s1589, 0
          %s1599 = sadd.s32 %s24, %s1596
          %s1600 = smul.addr %s1599, 4
          %s1601 = scalar_lea.hbm %s4, %s1600
          %s1602 = sshll.u32 %s1592, 4
          %s1603 = int_to_ptr.vmem [resolvable:$true] %s1602
          %s1604 = sshll.u32 %s1601, 4
          %s1605 = int_to_ptr.hbm [resolvable:$true] %s1604
          %1610 = dma.vmem_to_hbm [thread:$0]  %s1603, 4096, %s1605, %s1589, 64, 64, 4
        $region48: #{tpu_custom_call.1} parent=35 // pred_fallthru
          _
      $region36: #{tpu_custom_call.1} parent=5 // pred_fallthru
        _
      %p1611 = scmp.le.s32.totalorder 2, %s13
      // Predicated region
      $region49: #{tpu_custom_call.1} parent=5 // pred_check
        %p1612 = pneg %p1611
      $region50: #{tpu_custom_call.1} parent=5 // pred_check_branch
        %1614 = sbr.rel (%p1612) target = $region52
      $region51: #{tpu_custom_call.1} parent=5 // pred_region
        %s1615 = ssub.s32 %s13, 2
        // Predicated region
        $region53: #{tpu_custom_call.1} parent=51 // pred_check
          %p1616 = pneg %p171
        $region54: #{tpu_custom_call.1} parent=51 // pred_check_branch
          %1618 = sbr.rel (%p1616) target = $region56
        $region55: #{tpu_custom_call.1} parent=51 // pred_region
          %s1619 = sand.u32 %s156, 1
          %s1620 = scalar_lea.sflag [#allocation4], %s1619
          %s1621 = sand.u32 %s156, 1
          %s1622 = smul.addr %s1621, 256
          %s1623 = scalar_lea.vmem [#allocation3], %s1622
          %1625 = dma.done %s1620, 4096
        $region56: #{tpu_custom_call.1} parent=51 // pred_fallthru
          _
      $region52: #{tpu_custom_call.1} parent=5 // pred_fallthru
        _
    $region6: #{tpu_custom_call.1} parent=1 // loop_footer
      %s17 = sadd.s32 1, %s13
    $region7: #{tpu_custom_call.1} parent=1 // loop_footer_branch
      %12 = sbr.rel target = $region3
    $region8: #{tpu_custom_call.1} parent=1 // loop_exit
      _
    %1626 = vsyncpa [#allocation4], 1
    %s1627 = scalar_lea.sflag [#allocation4], 1
    %1628 = vsyncpa %s1627, 1

</llo_original>
